<compile_context>
chip_gen: v7x
topology: tpu7x:2x2x1
jax: 0.10.0
libtpu: 0.0.40
codegen_flags: <defaults>
</compile_context>

<pallas_src>
import functools

import jax
import jax.numpy as jnp
from jax import lax
from jax.experimental import pallas as pl
from jax.experimental.pallas import tpu as pltpu


def _fused_conv_bn_kernel(x_ref, w_ref, g_ref, b_ref, o_ref,
                          xpad_ref, sum_ref, ssq_ref, scale_ref, shift_ref,
                          *, nb, C, F, L, l_out, padding, kernel_size, dilation,
                          stride, count, eps, compute_dtype):
    """Fused Conv1d + training-mode BatchNorm1d.

    Grid = (phase, batch_block).  phase 0 accumulates per-filter stats, phase 1
    recomputes the conv and applies the folded BN scale/shift.

    x_ref:    (nb, C, L)      unpadded input block (L on lanes)
    w_ref:    (F, K*C)        conv weight, W[f, k*C + c] = weight[f, c, k]
    g_ref:    (F, 1)          BN gamma
    b_ref:    (F, 1)          BN beta
    o_ref:    (nb, F, l_out)  output block (lane-dense along L_out)
    xpad_ref: (C, L_pad)      VMEM halo scratch (padding columns kept at zero)
    sum_ref / ssq_ref:        (F, 1) persistent stats accumulators
    scale_ref / shift_ref:    (F, 1) folded BN scale / shift (written once)
    """
    phase = pl.program_id(0)
    j = pl.program_id(1)

    @pl.when(jnp.logical_and(phase == 0, j == 0))
    def _init_stats():
        sum_ref[...] = jnp.zeros_like(sum_ref)
        ssq_ref[...] = jnp.zeros_like(ssq_ref)

    # Keep the halo columns zero; the interior is overwritten per batch element
    # below.  (Replaces a wrapper jnp.pad that cost a full HBM pass over x.)
    if padding > 0:
        zeros_pad = jnp.zeros((C, padding), xpad_ref.dtype)
        xpad_ref[:, :padding] = zeros_pad
        xpad_ref[:, padding + L:] = zeros_pad

    def conv_one(b):
        """Conv1d for batch element `b` of the block -> (F, l_out) f32.

        NOTE: conv bias intentionally omitted -- it cancels exactly under
        training-mode BatchNorm (mean(y + bias) == mean(y) + bias).
        """
        xpad_ref[:, padding:padding + L] = x_ref[b]
        acc = None
        for k in range(kernel_size):                      # static, small trip count
            start = k * dilation
            if stride == 1:
                tap = xpad_ref[:, start:start + l_out]    # (C, l_out) lane-offset slice
            else:
                tap = xpad_ref[:, pl.ds(start, l_out, stride)]
            wk = w_ref[:, k * C:(k + 1) * C]              # (F, C) == weight[:, :, k]
            if compute_dtype is not None:
                tap = tap.astype(compute_dtype)
                wk = wk.astype(compute_dtype)
            part = jnp.dot(wk, tap, preferred_element_type=jnp.float32)
            acc = part if acc is None else acc + part     # f32 accumulation
        return acc

    @pl.when(phase == 0)
    def _stats_phase():
        for b in range(nb):
            y = conv_one(b)
            sum_ref[...] += jnp.sum(y, axis=1, keepdims=True)
            ssq_ref[...] += jnp.sum(y * y, axis=1, keepdims=True)

    @pl.when(jnp.logical_and(phase == 1, j == 0))
    def _fold_bn():
        inv_count = 1.0 / count
        mean = sum_ref[...] * inv_count
        # Clamp guards against tiny negative variance from E[y^2]-E[y]^2 cancellation.
        var = jnp.maximum(ssq_ref[...] * inv_count - mean * mean, 0.0)
        sc = g_ref[...] * lax.rsqrt(var + eps)
        scale_ref[...] = sc
        shift_ref[...] = b_ref[...] - mean * sc

    @pl.when(phase == 1)
    def _apply_phase():
        for b in range(nb):
            y = conv_one(b)
            o_ref[b] = (y * scale_ref[...] + shift_ref[...]).astype(o_ref.dtype)


def convolution_batch_norm(x, weight, bias, gamma, beta, *,
                           kernel_size, stride=1, dilation=1, eps=1e-5,
                           compute_dtype=None, max_batch_block=8):
    """x: (N, C, L), weight: (F, C, K).  Returns (N, F, L_out) = BN(Conv1d(x))
    with BatchNorm1d evaluated in training mode (batch stats, biased variance)."""
    del bias  # cancels exactly under training-mode BN; see kernel comment.
    N, C, L = x.shape
    F = weight.shape[0]
    padding = kernel_size // 2
    padding += padding * (dilation - 1)
    l_out = (L + 2 * padding - dilation * (kernel_size - 1) - 1) // stride + 1
    l_pad = L + 2 * padding

    # Glue (no activation transposes / pads): flatten the weight taps, reshape BN params.
    w_fkc = jnp.transpose(weight, (0, 2, 1)).reshape(F, kernel_size * C)   # (F, K*C)
    g2 = gamma.reshape(F, 1).astype(jnp.float32)
    b2 = beta.reshape(F, 1).astype(jnp.float32)

    # Pick NB = batch elements per grid step: largest divisor of N (<= cap) whose
    # double-buffered blocks + scratch fit a budget that is safe on all
    # generations, including v7x (64 MiB physical / 32 MiB scoped default).
    itemsize = jnp.dtype(x.dtype).itemsize

    def _vmem_need(cand):
        return (2 * cand * C * L * itemsize                 # double-buffered x blocks
                + 2 * cand * F * l_out * itemsize           # double-buffered out blocks
                + C * l_pad * itemsize                      # halo scratch
                + (kernel_size * C + 6) * F * 4)            # weight + BN params + stats

    budget = 20 * 2 ** 20
    nb = 1
    for cand in range(1, min(N, max_batch_block) + 1):
        if N % cand == 0 and _vmem_need(cand) <= budget:
            nb = cand
    n_blocks = N // nb

    compiler_kwargs = {}
    vmem_need = _vmem_need(nb)
    if vmem_need > 12 * 2 ** 20:   # may exceed the smallest scoped default (v5e: 16 MiB)
        compiler_kwargs["vmem_limit_bytes"] = int(min(64 * 2 ** 20, 2 * vmem_need))

    kernel = functools.partial(
        _fused_conv_bn_kernel,
        nb=nb, C=C, F=F, L=L, l_out=l_out, padding=padding,
        kernel_size=kernel_size, dilation=dilation, stride=stride,
        count=float(N * l_out), eps=float(eps), compute_dtype=compute_dtype)

    # Grid: (phase, batch_block).  Phase 0 never writes the output; its output
    # block index is pinned to 0 so no garbage block is ever flushed to HBM.
    out = pl.pallas_call(
        kernel,
        grid=(2, n_blocks),
        out_shape=jax.ShapeDtypeStruct((N, F, l_out), x.dtype),
        in_specs=[
            pl.BlockSpec((nb, C, L), lambda p, j: (j, 0, 0)),
            pl.BlockSpec((F, kernel_size * C), lambda p, j: (0, 0)),
            pl.BlockSpec((F, 1), lambda p, j: (0, 0)),
            pl.BlockSpec((F, 1), lambda p, j: (0, 0)),
        ],
        out_specs=pl.BlockSpec((nb, F, l_out), lambda p, j: (p * j, 0, 0)),
        scratch_shapes=[
            pltpu.VMEM((C, l_pad), x.dtype),      # halo-padded input slab
            pltpu.VMEM((F, 1), jnp.float32),      # per-filter sum
            pltpu.VMEM((F, 1), jnp.float32),      # per-filter sum of squares
            pltpu.VMEM((F, 1), jnp.float32),      # folded BN scale
            pltpu.VMEM((F, 1), jnp.float32),      # folded BN shift
        ],
        compiler_params=pltpu.CompilerParams(
            dimension_semantics=("arbitrary", "arbitrary"),
            **compiler_kwargs),
    )(x, w_fkc, g2, b2)
    return out


def _reference(x, weight, bias, gamma, beta, *, kernel_size, stride, dilation,
               eps=1e-5):
    """Pure-JAX reference mirroring nn.Conv1d + nn.BatchNorm1d (training mode)."""
    padding = kernel_size // 2
    padding += padding * (dilation - 1)
    y = lax.conv_general_dilated(
        x, weight,
        window_strides=(stride,),
        padding=[(padding, padding)],
        rhs_dilation=(dilation,),
        dimension_numbers=("NCH", "OIH", "NCH"),
    ) + bias[None, :, None]
    mean = jnp.mean(y, axis=(0, 2), keepdims=True)
    var = jnp.mean((y - mean) ** 2, axis=(0, 2), keepdims=True)
    return (y - mean) * lax.rsqrt(var + eps) * gamma[None, :, None] + \
        beta[None, :, None]


if __name__ == "__main__":
    # Module hyper-params (small, consistent with Conv1d/BatchNorm1d usage).
    channels, filters, kernel_size = 4, 8, 3
    stride, dilation = 1, 1
    N, L = 2, 16

    key = jax.random.PRNGKey(0)
    kx, kw, kb = jax.random.split(key, 3)

    x = jax.random.normal(kx, (N, channels, L), dtype=jnp.float32)

    # Deterministic parameter init mimicking PyTorch defaults:
    # conv weight/bias ~ U(-bound, bound), bound = 1/sqrt(C*K); BN gamma=1, beta=0.
    fan_in = channels * kernel_size
    bound = 1.0 / (fan_in ** 0.5)
    weight = jax.random.uniform(kw, (filters, channels, kernel_size),
                                minval=-bound, maxval=bound, dtype=jnp.float32)
    bias = jax.random.uniform(kb, (filters,), minval=-bound, maxval=bound,
                              dtype=jnp.float32)
    gamma = jnp.ones((filters,), jnp.float32)
    beta = jnp.zeros((filters,), jnp.float32)

    out = convolution_batch_norm(
        x, weight, bias, gamma, beta,
        kernel_size=kernel_size, stride=stride, dilation=dilation)
    out = jax.block_until_ready(out)

    ref = _reference(x, weight, bias, gamma, beta,
                     kernel_size=kernel_size, stride=stride, dilation=dilation)
    assert out.shape == (N, filters, L), out.shape
    assert jnp.allclose(out, ref, atol=1e-4, rtol=1e-4), \
        float(jnp.max(jnp.abs(out - ref)))

    print("KERNEL_OK")
</pallas_src>

<mosaic_0001>
module attributes {stable_mosaic.version = 11 : i64} {
  func.func @_fused_conv_bn_kernel(%arg0: i32, %arg1: i32, %arg2: memref<2x4x16xf32, #tpu.memory_space<vmem>>, %arg3: memref<8x12xf32, #tpu.memory_space<vmem>>, %arg4: memref<8x1xf32, #tpu.memory_space<vmem>>, %arg5: memref<8x1xf32, #tpu.memory_space<vmem>>, %arg6: memref<2x8x16xf32, #tpu.memory_space<vmem>>, %arg7: memref<4x18xf32, #tpu.memory_space<vmem>>, %arg8: memref<8x1xf32, #tpu.memory_space<vmem>>, %arg9: memref<8x1xf32, #tpu.memory_space<vmem>>, %arg10: memref<8x1xf32, #tpu.memory_space<vmem>>, %arg11: memref<8x1xf32, #tpu.memory_space<vmem>>) attributes {dimension_semantics = [#tpu.dimension_semantics<arbitrary>, #tpu.dimension_semantics<arbitrary>], iteration_bounds = array<i64: 2, 1>, scalar_prefetch = 0 : i64, scratch_operands = 5 : i64, tpu.core_type = #tpu.core_type<tc>, window_params = [{transform_indices = @transform_0, window_bounds = array<i64: 2, 4, 16>}, {pipeline_mode = #tpu.pipeline_mode<synchronous>, transform_indices = @transform_1, window_bounds = array<i64: 8, 12>}, {pipeline_mode = #tpu.pipeline_mode<synchronous>, transform_indices = @transform_2, window_bounds = array<i64: 8, 1>}, {pipeline_mode = #tpu.pipeline_mode<synchronous>, transform_indices = @transform_3, window_bounds = array<i64: 8, 1>}, {transform_indices = @transform_4, window_bounds = array<i64: 2, 8, 16>}]} {
    %c0_i32 = arith.constant 0 : i32
    %0 = arith.cmpi eq, %arg0, %c0_i32 : i32
    %c0_i32_0 = arith.constant 0 : i32
    %1 = arith.cmpi eq, %arg1, %c0_i32_0 : i32
    %2 = arith.andi %0, %1 : i1
    %3 = arith.extui %2 : i1 to i32
    %c0_i32_1 = arith.constant 0 : i32
    %4 = arith.cmpi ne, %3, %c0_i32_1 : i32
    scf.if %4 {
      %cst_10 = arith.constant 0.000000e+00 : f32
      %19 = vector.broadcast %cst_10 : f32 to vector<8x1xf32>
      %c0_11 = arith.constant 0 : index
      %c0_12 = arith.constant 0 : index
      %20 = vector.load %arg8[%c0_11, %c0_12] : memref<8x1xf32, #tpu.memory_space<vmem>>, vector<8x1xf32>
      tpu.vector_store %arg8[%c0_11, %c0_12], %19 {strides = array<i32>} : memref<8x1xf32, #tpu.memory_space<vmem>>, vector<8x1xf32>,
      %cst_13 = arith.constant 0.000000e+00 : f32
      %21 = vector.broadcast %cst_13 : f32 to vector<8x1xf32>
      %c0_14 = arith.constant 0 : index
      %c0_15 = arith.constant 0 : index
      %22 = vector.load %arg9[%c0_14, %c0_15] : memref<8x1xf32, #tpu.memory_space<vmem>>, vector<8x1xf32>
      tpu.vector_store %arg9[%c0_14, %c0_15], %21 {strides = array<i32>} : memref<8x1xf32, #tpu.memory_space<vmem>>, vector<8x1xf32>,
    } else {
    }
    %cst = arith.constant 0.000000e+00 : f32
    %5 = vector.broadcast %cst : f32 to vector<4x1xf32>
    %c0 = arith.constant 0 : index
    %c0_2 = arith.constant 0 : index
    %6 = vector.load %arg7[%c0, %c0_2] : memref<4x18xf32, #tpu.memory_space<vmem>>, vector<4x1xf32>
    tpu.vector_store %arg7[%c0, %c0_2], %5 {strides = array<i32>} : memref<4x18xf32, #tpu.memory_space<vmem>>, vector<4x1xf32>,
    %c0_3 = arith.constant 0 : index
    %c17 = arith.constant 17 : index
    %7 = vector.load %arg7[%c0_3, %c17] : memref<4x18xf32, #tpu.memory_space<vmem>>, vector<4x1xf32>
    tpu.vector_store %arg7[%c0_3, %c17], %5 {strides = array<i32>} : memref<4x18xf32, #tpu.memory_space<vmem>>, vector<4x1xf32>,
    %c0_i32_4 = arith.constant 0 : i32
    %8 = arith.cmpi eq, %arg0, %c0_i32_4 : i32
    %9 = arith.extui %8 : i1 to i32
    %c0_i32_5 = arith.constant 0 : i32
    %10 = arith.cmpi ne, %9, %c0_i32_5 : i32
    scf.if %10 {
      %c0_10 = arith.constant 0 : index
      %c0_11 = arith.constant 0 : index
      %c0_12 = arith.constant 0 : index
      %19 = vector.load %arg2[%c0_10, %c0_11, %c0_12] : memref<2x4x16xf32, #tpu.memory_space<vmem>>, vector<1x4x16xf32>
      %20 = vector.shape_cast %19 : vector<1x4x16xf32> to vector<4x16xf32>
      %c0_13 = arith.constant 0 : index
      %c1 = arith.constant 1 : index
      %21 = vector.load %arg7[%c0_13, %c1] : memref<4x18xf32, #tpu.memory_space<vmem>>, vector<4x16xf32>
      tpu.vector_store %arg7[%c0_13, %c1], %20 {strides = array<i32>} : memref<4x18xf32, #tpu.memory_space<vmem>>, vector<4x16xf32>,
      %c0_14 = arith.constant 0 : index
      %c0_15 = arith.constant 0 : index
      %22 = vector.load %arg7[%c0_14, %c0_15] : memref<4x18xf32, #tpu.memory_space<vmem>>, vector<4x16xf32>
      %c0_16 = arith.constant 0 : index
      %c0_17 = arith.constant 0 : index
      %23 = vector.load %arg3[%c0_16, %c0_17] : memref<8x12xf32, #tpu.memory_space<vmem>>, vector<8x4xf32>
      %cst_18 = arith.constant dense<0.000000e+00> : vector<8x16xf32>
      %24 = tpu.matmul %23, %22, %cst_18 {dimension_numbers = #tpu.dot_dimension_numbers<[1], [0], [0], [1], [0, 0, 1, 1], [], []>} : vector<8x4xf32>, vector<4x16xf32>, vector<8x16xf32> -> vector<8x16xf32>
      %c0_19 = arith.constant 0 : index
      %c1_20 = arith.constant 1 : index
      %25 = vector.load %arg7[%c0_19, %c1_20] : memref<4x18xf32, #tpu.memory_space<vmem>>, vector<4x16xf32>
      %c0_21 = arith.constant 0 : index
      %c4 = arith.constant 4 : index
      %26 = vector.load %arg3[%c0_21, %c4] : memref<8x12xf32, #tpu.memory_space<vmem>>, vector<8x4xf32>
      %cst_22 = arith.constant dense<0.000000e+00> : vector<8x16xf32>
      %27 = tpu.matmul %26, %25, %cst_22 {dimension_numbers = #tpu.dot_dimension_numbers<[1], [0], [0], [1], [0, 0, 1, 1], [], []>} : vector<8x4xf32>, vector<4x16xf32>, vector<8x16xf32> -> vector<8x16xf32>
      %28 = arith.addf %24, %27 : vector<8x16xf32>
      %c0_23 = arith.constant 0 : index
      %c2 = arith.constant 2 : index
      %29 = vector.load %arg7[%c0_23, %c2] : memref<4x18xf32, #tpu.memory_space<vmem>>, vector<4x16xf32>
      %c0_24 = arith.constant 0 : index
      %c8 = arith.constant 8 : index
      %30 = vector.load %arg3[%c0_24, %c8] : memref<8x12xf32, #tpu.memory_space<vmem>>, vector<8x4xf32>
      %cst_25 = arith.constant dense<0.000000e+00> : vector<8x16xf32>
      %31 = tpu.matmul %30, %29, %cst_25 {dimension_numbers = #tpu.dot_dimension_numbers<[1], [0], [0], [1], [0, 0, 1, 1], [], []>} : vector<8x4xf32>, vector<4x16xf32>, vector<8x16xf32> -> vector<8x16xf32>
      %32 = arith.addf %28, %31 : vector<8x16xf32>
      %c0_26 = arith.constant 0 : index
      %c0_27 = arith.constant 0 : index
      %33 = vector.load %arg8[%c0_26, %c0_27] : memref<8x1xf32, #tpu.memory_space<vmem>>, vector<8x1xf32>
      %cst_28 = arith.constant dense<0.000000e+00> : vector<8xf32>
      %34 = vector.multi_reduction <add>, %32, %cst_28 [1] : vector<8x16xf32> to vector<8xf32>
      %35 = vector.shape_cast %34 : vector<8xf32> to vector<8x1xf32>
      %36 = arith.addf %33, %35 : vector<8x1xf32>
      %c0_29 = arith.constant 0 : index
      %c0_30 = arith.constant 0 : index
      %37 = vector.load %arg8[%c0_29, %c0_30] : memref<8x1xf32, #tpu.memory_space<vmem>>, vector<8x1xf32>
      tpu.vector_store %arg8[%c0_29, %c0_30], %36 {strides = array<i32>} : memref<8x1xf32, #tpu.memory_space<vmem>>, vector<8x1xf32>,
      %c0_31 = arith.constant 0 : index
      %c0_32 = arith.constant 0 : index
      %38 = vector.load %arg9[%c0_31, %c0_32] : memref<8x1xf32, #tpu.memory_space<vmem>>, vector<8x1xf32>
      %39 = arith.mulf %32, %32 : vector<8x16xf32>
      %cst_33 = arith.constant dense<0.000000e+00> : vector<8xf32>
      %40 = vector.multi_reduction <add>, %39, %cst_33 [1] : vector<8x16xf32> to vector<8xf32>
      %41 = vector.shape_cast %40 : vector<8xf32> to vector<8x1xf32>
      %42 = arith.addf %38, %41 : vector<8x1xf32>
      %c0_34 = arith.constant 0 : index
      %c0_35 = arith.constant 0 : index
      %43 = vector.load %arg9[%c0_34, %c0_35] : memref<8x1xf32, #tpu.memory_space<vmem>>, vector<8x1xf32>
      tpu.vector_store %arg9[%c0_34, %c0_35], %42 {strides = array<i32>} : memref<8x1xf32, #tpu.memory_space<vmem>>, vector<8x1xf32>,
      %c1_36 = arith.constant 1 : index
      %c0_37 = arith.constant 0 : index
      %c0_38 = arith.constant 0 : index
      %44 = vector.load %arg2[%c1_36, %c0_37, %c0_38] : memref<2x4x16xf32, #tpu.memory_space<vmem>>, vector<1x4x16xf32>
      %45 = vector.shape_cast %44 : vector<1x4x16xf32> to vector<4x16xf32>
      %c0_39 = arith.constant 0 : index
      %c1_40 = arith.constant 1 : index
      %46 = vector.load %arg7[%c0_39, %c1_40] : memref<4x18xf32, #tpu.memory_space<vmem>>, vector<4x16xf32>
      tpu.vector_store %arg7[%c0_39, %c1_40], %45 {strides = array<i32>} : memref<4x18xf32, #tpu.memory_space<vmem>>, vector<4x16xf32>,
      %c0_41 = arith.constant 0 : index
      %c0_42 = arith.constant 0 : index
      %47 = vector.load %arg7[%c0_41, %c0_42] : memref<4x18xf32, #tpu.memory_space<vmem>>, vector<4x16xf32>
      %c0_43 = arith.constant 0 : index
      %c0_44 = arith.constant 0 : index
      %48 = vector.load %arg3[%c0_43, %c0_44] : memref<8x12xf32, #tpu.memory_space<vmem>>, vector<8x4xf32>
      %cst_45 = arith.constant dense<0.000000e+00> : vector<8x16xf32>
      %49 = tpu.matmul %48, %47, %cst_45 {dimension_numbers = #tpu.dot_dimension_numbers<[1], [0], [0], [1], [0, 0, 1, 1], [], []>} : vector<8x4xf32>, vector<4x16xf32>, vector<8x16xf32> -> vector<8x16xf32>
      %c0_46 = arith.constant 0 : index
      %c1_47 = arith.constant 1 : index
      %50 = vector.load %arg7[%c0_46, %c1_47] : memref<4x18xf32, #tpu.memory_space<vmem>>, vector<4x16xf32>
      %c0_48 = arith.constant 0 : index
      %c4_49 = arith.constant 4 : index
      %51 = vector.load %arg3[%c0_48, %c4_49] : memref<8x12xf32, #tpu.memory_space<vmem>>, vector<8x4xf32>
      %cst_50 = arith.constant dense<0.000000e+00> : vector<8x16xf32>
      %52 = tpu.matmul %51, %50, %cst_50 {dimension_numbers = #tpu.dot_dimension_numbers<[1], [0], [0], [1], [0, 0, 1, 1], [], []>} : vector<8x4xf32>, vector<4x16xf32>, vector<8x16xf32> -> vector<8x16xf32>
      %53 = arith.addf %49, %52 : vector<8x16xf32>
      %c0_51 = arith.constant 0 : index
      %c2_52 = arith.constant 2 : index
      %54 = vector.load %arg7[%c0_51, %c2_52] : memref<4x18xf32, #tpu.memory_space<vmem>>, vector<4x16xf32>
      %c0_53 = arith.constant 0 : index
      %c8_54 = arith.constant 8 : index
      %55 = vector.load %arg3[%c0_53, %c8_54] : memref<8x12xf32, #tpu.memory_space<vmem>>, vector<8x4xf32>
      %cst_55 = arith.constant dense<0.000000e+00> : vector<8x16xf32>
      %56 = tpu.matmul %55, %54, %cst_55 {dimension_numbers = #tpu.dot_dimension_numbers<[1], [0], [0], [1], [0, 0, 1, 1], [], []>} : vector<8x4xf32>, vector<4x16xf32>, vector<8x16xf32> -> vector<8x16xf32>
      %57 = arith.addf %53, %56 : vector<8x16xf32>
      %c0_56 = arith.constant 0 : index
      %c0_57 = arith.constant 0 : index
      %58 = vector.load %arg8[%c0_56, %c0_57] : memref<8x1xf32, #tpu.memory_space<vmem>>, vector<8x1xf32>
      %cst_58 = arith.constant dense<0.000000e+00> : vector<8xf32>
      %59 = vector.multi_reduction <add>, %57, %cst_58 [1] : vector<8x16xf32> to vector<8xf32>
      %60 = vector.shape_cast %59 : vector<8xf32> to vector<8x1xf32>
      %61 = arith.addf %58, %60 : vector<8x1xf32>
      %c0_59 = arith.constant 0 : index
      %c0_60 = arith.constant 0 : index
      %62 = vector.load %arg8[%c0_59, %c0_60] : memref<8x1xf32, #tpu.memory_space<vmem>>, vector<8x1xf32>
      tpu.vector_store %arg8[%c0_59, %c0_60], %61 {strides = array<i32>} : memref<8x1xf32, #tpu.memory_space<vmem>>, vector<8x1xf32>,
      %c0_61 = arith.constant 0 : index
      %c0_62 = arith.constant 0 : index
      %63 = vector.load %arg9[%c0_61, %c0_62] : memref<8x1xf32, #tpu.memory_space<vmem>>, vector<8x1xf32>
      %64 = arith.mulf %57, %57 : vector<8x16xf32>
      %cst_63 = arith.constant dense<0.000000e+00> : vector<8xf32>
      %65 = vector.multi_reduction <add>, %64, %cst_63 [1] : vector<8x16xf32> to vector<8xf32>
      %66 = vector.shape_cast %65 : vector<8xf32> to vector<8x1xf32>
      %67 = arith.addf %63, %66 : vector<8x1xf32>
      %c0_64 = arith.constant 0 : index
      %c0_65 = arith.constant 0 : index
      %68 = vector.load %arg9[%c0_64, %c0_65] : memref<8x1xf32, #tpu.memory_space<vmem>>, vector<8x1xf32>
      tpu.vector_store %arg9[%c0_64, %c0_65], %67 {strides = array<i32>} : memref<8x1xf32, #tpu.memory_space<vmem>>, vector<8x1xf32>,
    } else {
    }
    %c1_i32 = arith.constant 1 : i32
    %11 = arith.cmpi eq, %arg0, %c1_i32 : i32
    %c0_i32_6 = arith.constant 0 : i32
    %12 = arith.cmpi eq, %arg1, %c0_i32_6 : i32
    %13 = arith.andi %11, %12 : i1
    %14 = arith.extui %13 : i1 to i32
    %c0_i32_7 = arith.constant 0 : i32
    %15 = arith.cmpi ne, %14, %c0_i32_7 : i32
    scf.if %15 {
      %c0_10 = arith.constant 0 : index
      %c0_11 = arith.constant 0 : index
      %19 = vector.load %arg8[%c0_10, %c0_11] : memref<8x1xf32, #tpu.memory_space<vmem>>, vector<8x1xf32>
      %cst_12 = arith.constant 3.125000e-02 : f32
      %20 = vector.broadcast %cst_12 : f32 to vector<8x1xf32>
      %21 = arith.mulf %19, %20 : vector<8x1xf32>
      %c0_13 = arith.constant 0 : index
      %c0_14 = arith.constant 0 : index
      %22 = vector.load %arg9[%c0_13, %c0_14] : memref<8x1xf32, #tpu.memory_space<vmem>>, vector<8x1xf32>
      %cst_15 = arith.constant 3.125000e-02 : f32
      %23 = vector.broadcast %cst_15 : f32 to vector<8x1xf32>
      %24 = arith.mulf %22, %23 : vector<8x1xf32>
      %25 = arith.mulf %21, %21 : vector<8x1xf32>
      %26 = arith.subf %24, %25 : vector<8x1xf32>
      %cst_16 = arith.constant 0.000000e+00 : f32
      %27 = vector.broadcast %cst_16 : f32 to vector<8x1xf32>
      %28 = arith.maximumf %26, %27 : vector<8x1xf32>
      %c0_17 = arith.constant 0 : index
      %c0_18 = arith.constant 0 : index
      %29 = vector.load %arg4[%c0_17, %c0_18] : memref<8x1xf32, #tpu.memory_space<vmem>>, vector<8x1xf32>
      %cst_19 = arith.constant 9.99999974E-6 : f32
      %30 = vector.broadcast %cst_19 : f32 to vector<8x1xf32>
      %31 = arith.addf %28, %30 : vector<8x1xf32>
      %32 = math.rsqrt %31 : vector<8x1xf32>
      %33 = arith.mulf %29, %32 : vector<8x1xf32>
      %c0_20 = arith.constant 0 : index
      %c0_21 = arith.constant 0 : index
      %34 = vector.load %arg10[%c0_20, %c0_21] : memref<8x1xf32, #tpu.memory_space<vmem>>, vector<8x1xf32>
      tpu.vector_store %arg10[%c0_20, %c0_21], %33 {strides = array<i32>} : memref<8x1xf32, #tpu.memory_space<vmem>>, vector<8x1xf32>,
      %c0_22 = arith.constant 0 : index
      %c0_23 = arith.constant 0 : index
      %35 = vector.load %arg5[%c0_22, %c0_23] : memref<8x1xf32, #tpu.memory_space<vmem>>, vector<8x1xf32>
      %36 = arith.mulf %21, %33 : vector<8x1xf32>
      %37 = arith.subf %35, %36 : vector<8x1xf32>
      %c0_24 = arith.constant 0 : index
      %c0_25 = arith.constant 0 : index
      %38 = vector.load %arg11[%c0_24, %c0_25] : memref<8x1xf32, #tpu.memory_space<vmem>>, vector<8x1xf32>
      tpu.vector_store %arg11[%c0_24, %c0_25], %37 {strides = array<i32>} : memref<8x1xf32, #tpu.memory_space<vmem>>, vector<8x1xf32>,
    } else {
    }
    %c1_i32_8 = arith.constant 1 : i32
    %16 = arith.cmpi eq, %arg0, %c1_i32_8 : i32
    %17 = arith.extui %16 : i1 to i32
    %c0_i32_9 = arith.constant 0 : i32
    %18 = arith.cmpi ne, %17, %c0_i32_9 : i32
    scf.if %18 {
      %c0_10 = arith.constant 0 : index
      %c0_11 = arith.constant 0 : index
      %c0_12 = arith.constant 0 : index
      %19 = vector.load %arg2[%c0_10, %c0_11, %c0_12] : memref<2x4x16xf32, #tpu.memory_space<vmem>>, vector<1x4x16xf32>
      %20 = vector.shape_cast %19 : vector<1x4x16xf32> to vector<4x16xf32>
      %c0_13 = arith.constant 0 : index
      %c1 = arith.constant 1 : index
      %21 = vector.load %arg7[%c0_13, %c1] : memref<4x18xf32, #tpu.memory_space<vmem>>, vector<4x16xf32>
      tpu.vector_store %arg7[%c0_13, %c1], %20 {strides = array<i32>} : memref<4x18xf32, #tpu.memory_space<vmem>>, vector<4x16xf32>,
      %c0_14 = arith.constant 0 : index
      %c0_15 = arith.constant 0 : index
      %22 = vector.load %arg7[%c0_14, %c0_15] : memref<4x18xf32, #tpu.memory_space<vmem>>, vector<4x16xf32>
      %c0_16 = arith.constant 0 : index
      %c0_17 = arith.constant 0 : index
      %23 = vector.load %arg3[%c0_16, %c0_17] : memref<8x12xf32, #tpu.memory_space<vmem>>, vector<8x4xf32>
      %cst_18 = arith.constant dense<0.000000e+00> : vector<8x16xf32>
      %24 = tpu.matmul %23, %22, %cst_18 {dimension_numbers = #tpu.dot_dimension_numbers<[1], [0], [0], [1], [0, 0, 1, 1], [], []>} : vector<8x4xf32>, vector<4x16xf32>, vector<8x16xf32> -> vector<8x16xf32>
      %c0_19 = arith.constant 0 : index
      %c1_20 = arith.constant 1 : index
      %25 = vector.load %arg7[%c0_19, %c1_20] : memref<4x18xf32, #tpu.memory_space<vmem>>, vector<4x16xf32>
      %c0_21 = arith.constant 0 : index
      %c4 = arith.constant 4 : index
      %26 = vector.load %arg3[%c0_21, %c4] : memref<8x12xf32, #tpu.memory_space<vmem>>, vector<8x4xf32>
      %cst_22 = arith.constant dense<0.000000e+00> : vector<8x16xf32>
      %27 = tpu.matmul %26, %25, %cst_22 {dimension_numbers = #tpu.dot_dimension_numbers<[1], [0], [0], [1], [0, 0, 1, 1], [], []>} : vector<8x4xf32>, vector<4x16xf32>, vector<8x16xf32> -> vector<8x16xf32>
      %28 = arith.addf %24, %27 : vector<8x16xf32>
      %c0_23 = arith.constant 0 : index
      %c2 = arith.constant 2 : index
      %29 = vector.load %arg7[%c0_23, %c2] : memref<4x18xf32, #tpu.memory_space<vmem>>, vector<4x16xf32>
      %c0_24 = arith.constant 0 : index
      %c8 = arith.constant 8 : index
      %30 = vector.load %arg3[%c0_24, %c8] : memref<8x12xf32, #tpu.memory_space<vmem>>, vector<8x4xf32>
      %cst_25 = arith.constant dense<0.000000e+00> : vector<8x16xf32>
      %31 = tpu.matmul %30, %29, %cst_25 {dimension_numbers = #tpu.dot_dimension_numbers<[1], [0], [0], [1], [0, 0, 1, 1], [], []>} : vector<8x4xf32>, vector<4x16xf32>, vector<8x16xf32> -> vector<8x16xf32>
      %32 = arith.addf %28, %31 : vector<8x16xf32>
      %c0_26 = arith.constant 0 : index
      %c0_27 = arith.constant 0 : index
      %33 = vector.load %arg10[%c0_26, %c0_27] : memref<8x1xf32, #tpu.memory_space<vmem>>, vector<8x1xf32>
      %34 = vector.broadcast %33 : vector<8x1xf32> to vector<8x16xf32>
      %35 = arith.mulf %32, %34 : vector<8x16xf32>
      %c0_28 = arith.constant 0 : index
      %c0_29 = arith.constant 0 : index
      %36 = vector.load %arg11[%c0_28, %c0_29] : memref<8x1xf32, #tpu.memory_space<vmem>>, vector<8x1xf32>
      %37 = vector.broadcast %36 : vector<8x1xf32> to vector<8x16xf32>
      %38 = arith.addf %35, %37 : vector<8x16xf32>
      %c0_30 = arith.constant 0 : index
      %c0_31 = arith.constant 0 : index
      %c0_32 = arith.constant 0 : index
      %39 = vector.load %arg6[%c0_30, %c0_31, %c0_32] : memref<2x8x16xf32, #tpu.memory_space<vmem>>, vector<1x8x16xf32>
      %40 = vector.shape_cast %39 : vector<1x8x16xf32> to vector<8x16xf32>
      %41 = vector.shape_cast %38 : vector<8x16xf32> to vector<1x8x16xf32>
      tpu.vector_store %arg6[%c0_30, %c0_31, %c0_32], %41 {strides = array<i32>} : memref<2x8x16xf32, #tpu.memory_space<vmem>>, vector<1x8x16xf32>,
      %c1_33 = arith.constant 1 : index
      %c0_34 = arith.constant 0 : index
      %c0_35 = arith.constant 0 : index
      %42 = vector.load %arg2[%c1_33, %c0_34, %c0_35] : memref<2x4x16xf32, #tpu.memory_space<vmem>>, vector<1x4x16xf32>
      %43 = vector.shape_cast %42 : vector<1x4x16xf32> to vector<4x16xf32>
      %c0_36 = arith.constant 0 : index
      %c1_37 = arith.constant 1 : index
      %44 = vector.load %arg7[%c0_36, %c1_37] : memref<4x18xf32, #tpu.memory_space<vmem>>, vector<4x16xf32>
      tpu.vector_store %arg7[%c0_36, %c1_37], %43 {strides = array<i32>} : memref<4x18xf32, #tpu.memory_space<vmem>>, vector<4x16xf32>,
      %c0_38 = arith.constant 0 : index
      %c0_39 = arith.constant 0 : index
      %45 = vector.load %arg7[%c0_38, %c0_39] : memref<4x18xf32, #tpu.memory_space<vmem>>, vector<4x16xf32>
      %c0_40 = arith.constant 0 : index
      %c0_41 = arith.constant 0 : index
      %46 = vector.load %arg3[%c0_40, %c0_41] : memref<8x12xf32, #tpu.memory_space<vmem>>, vector<8x4xf32>
      %cst_42 = arith.constant dense<0.000000e+00> : vector<8x16xf32>
      %47 = tpu.matmul %46, %45, %cst_42 {dimension_numbers = #tpu.dot_dimension_numbers<[1], [0], [0], [1], [0, 0, 1, 1], [], []>} : vector<8x4xf32>, vector<4x16xf32>, vector<8x16xf32> -> vector<8x16xf32>
      %c0_43 = arith.constant 0 : index
      %c1_44 = arith.constant 1 : index
      %48 = vector.load %arg7[%c0_43, %c1_44] : memref<4x18xf32, #tpu.memory_space<vmem>>, vector<4x16xf32>
      %c0_45 = arith.constant 0 : index
      %c4_46 = arith.constant 4 : index
      %49 = vector.load %arg3[%c0_45, %c4_46] : memref<8x12xf32, #tpu.memory_space<vmem>>, vector<8x4xf32>
      %cst_47 = arith.constant dense<0.000000e+00> : vector<8x16xf32>
      %50 = tpu.matmul %49, %48, %cst_47 {dimension_numbers = #tpu.dot_dimension_numbers<[1], [0], [0], [1], [0, 0, 1, 1], [], []>} : vector<8x4xf32>, vector<4x16xf32>, vector<8x16xf32> -> vector<8x16xf32>
      %51 = arith.addf %47, %50 : vector<8x16xf32>
      %c0_48 = arith.constant 0 : index
      %c2_49 = arith.constant 2 : index
      %52 = vector.load %arg7[%c0_48, %c2_49] : memref<4x18xf32, #tpu.memory_space<vmem>>, vector<4x16xf32>
      %c0_50 = arith.constant 0 : index
      %c8_51 = arith.constant 8 : index
      %53 = vector.load %arg3[%c0_50, %c8_51] : memref<8x12xf32, #tpu.memory_space<vmem>>, vector<8x4xf32>
      %cst_52 = arith.constant dense<0.000000e+00> : vector<8x16xf32>
      %54 = tpu.matmul %53, %52, %cst_52 {dimension_numbers = #tpu.dot_dimension_numbers<[1], [0], [0], [1], [0, 0, 1, 1], [], []>} : vector<8x4xf32>, vector<4x16xf32>, vector<8x16xf32> -> vector<8x16xf32>
      %55 = arith.addf %51, %54 : vector<8x16xf32>
      %c0_53 = arith.constant 0 : index
      %c0_54 = arith.constant 0 : index
      %56 = vector.load %arg10[%c0_53, %c0_54] : memref<8x1xf32, #tpu.memory_space<vmem>>, vector<8x1xf32>
      %57 = vector.broadcast %56 : vector<8x1xf32> to vector<8x16xf32>
      %58 = arith.mulf %55, %57 : vector<8x16xf32>
      %c0_55 = arith.constant 0 : index
      %c0_56 = arith.constant 0 : index
      %59 = vector.load %arg11[%c0_55, %c0_56] : memref<8x1xf32, #tpu.memory_space<vmem>>, vector<8x1xf32>
      %60 = vector.broadcast %59 : vector<8x1xf32> to vector<8x16xf32>
      %61 = arith.addf %58, %60 : vector<8x16xf32>
      %c1_57 = arith.constant 1 : index
      %c0_58 = arith.constant 0 : index
      %c0_59 = arith.constant 0 : index
      %62 = vector.load %arg6[%c1_57, %c0_58, %c0_59] : memref<2x8x16xf32, #tpu.memory_space<vmem>>, vector<1x8x16xf32>
      %63 = vector.shape_cast %62 : vector<1x8x16xf32> to vector<8x16xf32>
      %64 = vector.shape_cast %61 : vector<8x16xf32> to vector<1x8x16xf32>
      tpu.vector_store %arg6[%c1_57, %c0_58, %c0_59], %64 {strides = array<i32>} : memref<2x8x16xf32, #tpu.memory_space<vmem>>, vector<1x8x16xf32>,
    } else {
    }
    return
  }
  func.func @transform_0(%arg0: i32, %arg1: i32) -> (i32, i32, i32) {
    %c0_i32 = arith.constant 0 : i32
    %c0_i32_0 = arith.constant 0 : i32
    %c0_i32_1 = arith.constant 0 : i32
    return %arg1, %c0_i32, %c0_i32_0 : i32, i32, i32
  }
  func.func @transform_1(%arg0: i32, %arg1: i32) -> (i32, i32) {
    %c0_i32 = arith.constant 0 : i32
    %c0_i32_0 = arith.constant 0 : i32
    %c0_i32_1 = arith.constant 0 : i32
    return %c0_i32, %c0_i32_0 : i32, i32
  }
  func.func @transform_2(%arg0: i32, %arg1: i32) -> (i32, i32) {
    %c0_i32 = arith.constant 0 : i32
    %c0_i32_0 = arith.constant 0 : i32
    %c0_i32_1 = arith.constant 0 : i32
    return %c0_i32, %c0_i32_0 : i32, i32
  }
  func.func @transform_3(%arg0: i32, %arg1: i32) -> (i32, i32) {
    %c0_i32 = arith.constant 0 : i32
    %c0_i32_0 = arith.constant 0 : i32
    %c0_i32_1 = arith.constant 0 : i32
    return %c0_i32, %c0_i32_0 : i32, i32
  }
  func.func @transform_4(%arg0: i32, %arg1: i32) -> (i32, i32, i32) {
    %0 = arith.muli %arg0, %arg1 : i32
    %c0_i32 = arith.constant 0 : i32
    %c0_i32_0 = arith.constant 0 : i32
    %c0_i32_1 = arith.constant 0 : i32
    return %0, %c0_i32, %c0_i32_0 : i32, i32, i32
  }
}

</mosaic_0001>

<llo_original>
// kernel: tpu_custom_call.1
$region0: #{tpu_custom_call.1}
  #allocation0 [shape = 'u32[]', space=smem, size = 0x4, offset = 0x4, fixed_abs, tag = 'smem constant byte address 0x4 - core index']
  #allocation1 [shape = 'u32[144,128]{1,0:T(1,128)}', space=vmem, size = 0x12000, scoped, tag = 'internal scratch']
  #allocation2 [shape = 'f32[4,18]{1,0:T(4,128)}', space=vmem, size = 0x800, scoped, tag = 'scratch operand']
  #allocation3 [shape = 'f32[8,1]{1,0:T(8,128)}', space=vmem, size = 0x1000, scoped, tag = 'scratch operand']
  #allocation4 [shape = 'f32[8,1]{1,0:T(8,128)}', space=vmem, size = 0x1000, scoped, tag = 'scratch operand']
  #allocation5 [shape = 'f32[8,1]{1,0:T(8,128)}', space=vmem, size = 0x1000, scoped, tag = 'scratch operand']
  #allocation6 [shape = 'f32[8,1]{1,0:T(8,128)}', space=vmem, size = 0x1000, scoped, tag = 'scratch operand']
  %s0 = inlined_call_operand.vmem [shape: f32[2,4,16], index: 0, kind: input, shape index: {}]
  %s1 = inlined_call_operand.vmem [shape: f32[8,12], index: 1, kind: input, shape index: {}]
  %s2 = inlined_call_operand.vmem [shape: f32[8,1], index: 2, kind: input, shape index: {}]
  %s3 = inlined_call_operand.vmem [shape: f32[8,1], index: 3, kind: input, shape index: {}]
  %s4 = inlined_call_operand.hbm [shape: f32[2,8,16], index: 4, kind: output, shape index: {}]
  %s5 = sld [smem:[#allocation0]]
  $region65: #{tpu_custom_call.1} parent=0
    _
  %s7 = ssub.s32 1, %s5
  %s8 = scalar_select 0, %s7, %s5
  $region1: #{tpu_custom_call.1} parent=0
    #allocation7 [shape = 'u8[16384]{0}', space=vmem, size = 0x4000, scoped, tag = 'output window, operand 0']
    #allocation8 [shape = 's32[2]{0}', space=sflag, size = 0x8, scoped, tag = 'scoped memory for tpu_custom_call.1']
    %9 = vsyncpa [#allocation8], 0
    %s10 = scalar_lea.sflag [#allocation8], 1
    %11 = vsyncpa %s10, 0
    loop: start=0, step=1, limit=4
    $region2: #{tpu_custom_call.1} parent=1 // loop_pre_header
      _
    $region3: #{tpu_custom_call.1} parent=1 // loop_header
      %s13 = sphi 0, %s17
      %p14 = scmp.ge.s32.totalorder %s13, 4
      %s20 = sphi 0, %s32
      %s21 = sphi 0, %s28
      %s22 = sphi 0, %s20
      %s23 = sphi 0, %s21
      %s24 = sphi 0, %s22
      %s25 = sphi 0, %s23
      %s35 = sphi 0, %s37
      %s38 = sphi 0, %s35
      %s39 = sphi 0, %s38
      %s55 = sphi 0, %s39
      %s59 = sphi 0, %s59
      %s61 = sphi 0, %s59
      %s62 = sphi 0, %s61
      %s76 = sphi 0, %s62
      %s80 = sphi 0, %s80
      %s82 = sphi 0, %s80
      %s83 = sphi 0, %s82
      %s97 = sphi 0, %s83
      %s101 = sphi 0, %s101
      %s103 = sphi 0, %s101
      %s104 = sphi 0, %s103
      %s118 = sphi 0, %s104
      %s126 = sphi 0, %s128
      %s129 = sphi 0, %s126
      %s130 = sphi 0, %s129
      %s146 = sphi 0, %s130
    $region4: #{tpu_custom_call.1} parent=1 // loop_header_branch
      %16 = sbr.rel (%p14) target = $region8
    $region5: #{tpu_custom_call.1} parent=1 // loop_body
      %s18 = ssub.s32 %s13, 1
      %s19 = ssub.s32 %s13, 2
      %s26 = sadd.s32 1, %s21
      %p27 = scmp.ge.s32.totalorder %s26, 1
      %s28 = scalar_select %p27, 0, %s26
      %s29 = sadd.s32 1, %s20
      %s30 = scalar_select %p27, %s29, %s20
      %p31 = scmp.ge.s32.totalorder %s30, 2
      %s32 = scalar_select %p31, 0, %s30
      %s33 = ssub.s32 %s21, %s28
      %p34 = scmp.eq.s32.totalorder %s33, 0
      %s36 = sadd.s32 %s35, 1
      %s37 = scalar_select %p34, %s35, %s36
      %p40 = pneg %p34
      %p41 = scmp.eq.s32.totalorder %s13, 1
      %p42 = por %p40, %p41
      %p43 = scmp.ne.s32.totalorder %s35, %s38
      %p44 = scmp.eq.s32.totalorder %s13, 0
      %p45 = por %p43, %p44
      %p46 = scmp.ne.s32.totalorder %s35, %s38
      %p47 = scmp.eq.s32.totalorder %s18, 1
      %p48 = por %p46, %p47
      %p49 = scmp.ne.s32.totalorder %s38, %s39
      %p50 = scmp.eq.s32.totalorder %s18, 0
      %p51 = por %p49, %p50
      %p52 = scmp.ne.s32.totalorder %s38, %s39
      %p53 = scmp.eq.s32.totalorder %s19, 1
      %p54 = por %p52, %p53
      %p56 = scmp.ne.s32.totalorder %s39, %s55
      %p57 = scmp.eq.s32.totalorder %s19, 0
      %p58 = por %p56, %p57
      %s60 = sadd.s32 %s59, 1
      %p63 = scmp.eq.s32.totalorder %s13, 1
      %p64 = scmp.ne.s32.totalorder %s59, %s61
      %p65 = scmp.eq.s32.totalorder %s13, 0
      %p66 = por %p64, %p65
      %p67 = scmp.ne.s32.totalorder %s59, %s61
      %p68 = scmp.eq.s32.totalorder %s18, 1
      %p69 = por %p67, %p68
      %p70 = scmp.ne.s32.totalorder %s61, %s62
      %p71 = scmp.eq.s32.totalorder %s18, 0
      %p72 = por %p70, %p71
      %p73 = scmp.ne.s32.totalorder %s61, %s62
      %p74 = scmp.eq.s32.totalorder %s19, 1
      %p75 = por %p73, %p74
      %p77 = scmp.ne.s32.totalorder %s62, %s76
      %p78 = scmp.eq.s32.totalorder %s19, 0
      %p79 = por %p77, %p78
      %s81 = sadd.s32 %s80, 1
      %p84 = scmp.eq.s32.totalorder %s13, 1
      %p85 = scmp.ne.s32.totalorder %s80, %s82
      %p86 = scmp.eq.s32.totalorder %s13, 0
      %p87 = por %p85, %p86
      %p88 = scmp.ne.s32.totalorder %s80, %s82
      %p89 = scmp.eq.s32.totalorder %s18, 1
      %p90 = por %p88, %p89
      %p91 = scmp.ne.s32.totalorder %s82, %s83
      %p92 = scmp.eq.s32.totalorder %s18, 0
      %p93 = por %p91, %p92
      %p94 = scmp.ne.s32.totalorder %s82, %s83
      %p95 = scmp.eq.s32.totalorder %s19, 1
      %p96 = por %p94, %p95
      %p98 = scmp.ne.s32.totalorder %s83, %s97
      %p99 = scmp.eq.s32.totalorder %s19, 0
      %p100 = por %p98, %p99
      %s102 = sadd.s32 %s101, 1
      %p105 = scmp.eq.s32.totalorder %s13, 1
      %p106 = scmp.ne.s32.totalorder %s101, %s103
      %p107 = scmp.eq.s32.totalorder %s13, 0
      %p108 = por %p106, %p107
      %p109 = scmp.ne.s32.totalorder %s101, %s103
      %p110 = scmp.eq.s32.totalorder %s18, 1
      %p111 = por %p109, %p110
      %p112 = scmp.ne.s32.totalorder %s103, %s104
      %p113 = scmp.eq.s32.totalorder %s18, 0
      %p114 = por %p112, %p113
      %p115 = scmp.ne.s32.totalorder %s103, %s104
      %p116 = scmp.eq.s32.totalorder %s19, 1
      %p117 = por %p115, %p116
      %p119 = scmp.ne.s32.totalorder %s104, %s118
      %p120 = scmp.eq.s32.totalorder %s19, 0
      %p121 = por %p119, %p120
      %s122 = smul.u32 %s20, %s21
      %s123 = smul.u32 %s32, %s28
      %s124 = ssub.s32 %s122, %s123
      %p125 = scmp.eq.s32.totalorder %s124, 0
      %s127 = sadd.s32 %s126, 1
      %s128 = scalar_select %p125, %s126, %s127
      %p131 = pneg %p125
      %p132 = scmp.eq.s32.totalorder %s13, 1
      %p133 = por %p131, %p132
      %p134 = scmp.ne.s32.totalorder %s126, %s129
      %p135 = scmp.eq.s32.totalorder %s13, 0
      %p136 = por %p134, %p135
      %p137 = scmp.ne.s32.totalorder %s126, %s129
      %p138 = scmp.eq.s32.totalorder %s18, 1
      %p139 = por %p137, %p138
      %p140 = scmp.ne.s32.totalorder %s129, %s130
      %p141 = scmp.eq.s32.totalorder %s18, 0
      %p142 = por %p140, %p141
      %p143 = scmp.ne.s32.totalorder %s129, %s130
      %p144 = scmp.eq.s32.totalorder %s19, 1
      %p145 = por %p143, %p144
      %p147 = scmp.ne.s32.totalorder %s130, %s146
      %p148 = scmp.eq.s32.totalorder %s19, 0
      %p149 = por %p147, %p148
      %p150 = scmp.le.s32.totalorder 1, %s13
      %p151 = scmp.lt.s32.totalorder %s13, 3
      %p152 = pnand %p150, %p151
      %p153 = pneg %p152
      // Predicated region
      $region9: #{tpu_custom_call.1} parent=5 // pred_check
        _
      $region10: #{tpu_custom_call.1} parent=5 // pred_check_branch
        %155 = sbr.rel (%p152) target = $region12
      $region11: #{tpu_custom_call.1} parent=5 // pred_region
        %s156 = ssub.s32 %s13, 1
        // Predicated region
        $region13: #{tpu_custom_call.1} parent=11 // pred_check
          %p157 = pneg %p51
        $region14: #{tpu_custom_call.1} parent=11 // pred_check_branch
          %159 = sbr.rel (%p157) target = $region16
        $region15: #{tpu_custom_call.1} parent=11 // pred_region
          %s160 = smul.u32 2, %s23
          %p161 = scmp.lt.s32.totalorder %s160, 1
          %s162 = scalar_select %p161, %s160, 1
          %s163 = smul.addr %s162, 4
          %s164 = scalar_lea.vmem %s0, %s163
          %s165 = smul.u32 2, %s23
        $region16: #{tpu_custom_call.1} parent=11 // pred_fallthru
          _
        // Predicated region
        $region17: #{tpu_custom_call.1} parent=11 // pred_check
          %p166 = pneg %p72
        $region18: #{tpu_custom_call.1} parent=11 // pred_check_branch
          %168 = sbr.rel (%p166) target = $region20
        $region19: #{tpu_custom_call.1} parent=11 // pred_region
          _
        $region20: #{tpu_custom_call.1} parent=11 // pred_fallthru
          _
        // Predicated region
        $region21: #{tpu_custom_call.1} parent=11 // pred_check
          %p169 = pneg %p93
        $region22: #{tpu_custom_call.1} parent=11 // pred_check_branch
          %171 = sbr.rel (%p169) target = $region24
        $region23: #{tpu_custom_call.1} parent=11 // pred_region
          _
        $region24: #{tpu_custom_call.1} parent=11 // pred_fallthru
          _
        // Predicated region
        $region25: #{tpu_custom_call.1} parent=11 // pred_check
          %p172 = pneg %p114
        $region26: #{tpu_custom_call.1} parent=11 // pred_check_branch
          %174 = sbr.rel (%p172) target = $region28
        $region27: #{tpu_custom_call.1} parent=11 // pred_region
          _
        $region28: #{tpu_custom_call.1} parent=11 // pred_fallthru
          _
      $region12: #{tpu_custom_call.1} parent=5 // pred_fallthru
        _
      %p175 = scmp.lt.s32.totalorder %s13, 2
      // Predicated region
      $region29: #{tpu_custom_call.1} parent=5 // pred_check
        %p176 = pneg %p175
      $region30: #{tpu_custom_call.1} parent=5 // pred_check_branch
        %178 = sbr.rel (%p176) target = $region32
      $region31: #{tpu_custom_call.1} parent=5 // pred_region
        _
      $region32: #{tpu_custom_call.1} parent=5 // pred_fallthru
        _
      %p179 = scmp.le.s32.totalorder 1, %s13
      %p180 = scmp.lt.s32.totalorder %s13, 3
      %p181 = pnand %p179, %p180
      %p182 = pneg %p181
      // Predicated region
      $region33: #{tpu_custom_call.1} parent=5 // pred_check
        _
      $region34: #{tpu_custom_call.1} parent=5 // pred_check_branch
        %184 = sbr.rel (%p181) target = $region36
      $region35: #{tpu_custom_call.1} parent=5 // pred_region
        %s185 = ssub.s32 %s13, 1
        %s186 = smul.u32 2, %s23
        %p187 = scmp.lt.s32.totalorder %s186, 1
        %s188 = scalar_select %p187, %s186, 1
        %s189 = smul.addr %s188, 4
        %s190 = scalar_lea.vmem %s0, %s189
        %p191 = pneg %p51
        %p192 = pneg %p48
        %p193 = pneg %p72
        %p194 = pneg %p69
        %p195 = pneg %p93
        %p196 = pneg %p90
        %p197 = pneg %p114
        %p198 = pneg %p111
        %p199 = pneg %p142
        %p200 = pneg %p139
        %s201 = sand.u32 %s129, 1
        %s202 = scalar_lea.sflag [#allocation8], %s201
        %s203 = sand.u32 %s129, 1
        %s204 = smul.addr %s203, 16
        %s205 = scalar_lea.vmem [#allocation7], %s204
        %s206 = smul.u32 2, %s23
        %p207 = scmp.lt.s32.totalorder %s206, 1
        %s208 = scalar_select %p207, %s206, 1
        %s209 = smul.addr %s208, 4
        %s210 = scalar_lea.vmem %s0, %s209
        %s211 = smul.u32 2, %s23
        %s212 = smul.u32 %s22, %s23
        %s213 = smul.u32 2, %s212
        %p214 = scmp.eq.s32.totalorder %s22, 0
        %p215 = scmp.eq.s32.totalorder %s23, 0
        %p216 = pnand %p214, %p215
        %p217 = pneg %p216
        // Predicated region
        $region37: #{tpu_custom_call.1} parent=35 // pred_check
          _
        $region38: #{tpu_custom_call.1} parent=35 // pred_check_branch
          %219 = sbr.rel (%p216) target = $region40
        $region39: #{tpu_custom_call.1} parent=35 // pred_region
          %vm220 = vcmask 7168
          %221 = vst.msk [vmem:[#allocation3] sm:$0xff] %vm220, 0.0
          %222 = vst.msk [vmem:[#allocation4] sm:$0xff] %vm220, 0.0
        $region40: #{tpu_custom_call.1} parent=35 // pred_fallthru
          _
        %vm223 = vcmask 3072
        %224 = vst.msk [vmem:[#allocation2] sm:$0xf] %vm223, 0.0
        %vm225 = vcmask 142472
        %226 = vst.msk [vmem:[#allocation2] sm:$0xf] %vm225, 0.0
        // Predicated region
        $region41: #{tpu_custom_call.1} parent=35 // pred_check
          %p227 = pneg %p214
        $region42: #{tpu_custom_call.1} parent=35 // pred_check_branch
          %229 = sbr.rel (%p227) target = $region44
        $region43: #{tpu_custom_call.1} parent=35 // pred_region
          %v230 = vld [vmem:[%s210] sm:$0xf]
          %232 = vrot.lane.b32.xlu0 %v230, 1
          %v233 = vpop.permute.xlu0 %232
          %vm235 = vcmask 134152
          %236 = vst.msk [vmem:[#allocation2] sm:$0xf] %vm235, %v233
          %v237 = vld [vmem:[#allocation2] sm:$0xf]
          %v238 = vld [vmem:[%s1] sm:$0xff]
          %240 = vrot.lane.b32.xlu0 %v238, 124
          %v241 = vpop.permute.xlu0 %240
          %243 = vrot.lane.b32.xlu0 %v237, 127
          %v244 = vpop.permute.xlu0 %243
          %vm245 = vcmask 31744
          %v246 = vsel %vm245, %v241, 0
          %vm248 = vcmask 1043456
          %v249 = vsel %vm248, %v244, 0
          %251 = vmatprep.subr.mxu0 0.0
          %252 = vmatpush1.msra.mxu0 %v249
          %253 = vmatprep.subr.mxu0 0.0
          %254 = vmatpush1.msra.mxu0 0.0
          %255 = vmatprep.subr.mxu0 0.0
          %256 = vmatpush1.msra.mxu0 0.0
          %257 = vmatprep.subr.mxu0 0.0
          %258 = vmatpush1.msra.mxu0 0.0
          %259 = vmatprep.subr.mxu0 0.0
          %260 = vmatpush1.msra.mxu0 0.0
          %261 = vmatprep.subr.mxu0 0.0
          %262 = vmatpush1.msra.mxu0 0.0
          %263 = vmatprep.subr.mxu0 0.0
          %264 = vmatpush1.msra.mxu0 0.0
          %265 = vmatprep.subr.mxu0 0.0
          %266 = vmatpush1.msra.mxu0 0.0
          %267 = vmatprep.subr.mxu0 0.0
          %268 = vmatpush1.msra.mxu0 0.0
          %269 = vmatprep.subr.mxu0 0.0
          %270 = vmatpush1.msra.mxu0 0.0
          %271 = vmatprep.subr.mxu0 0.0
          %272 = vmatpush1.msra.mxu0 0.0
          %273 = vmatprep.subr.mxu0 0.0
          %274 = vmatpush1.msra.mxu0 0.0
          %275 = vmatprep.subr.mxu0 0.0
          %276 = vmatpush1.msra.mxu0 0.0
          %277 = vmatprep.subr.mxu0 0.0
          %278 = vmatpush1.msra.mxu0 0.0
          %279 = vmatprep.subr.mxu0 0.0
          %280 = vmatpush1.msra.mxu0 0.0
          %281 = vmatprep.subr.mxu0 0.0
          %282 = vmatpush1.msra.mxu0 0.0
          %283 = vmatprep.subr.mxu0 0.0
          %284 = vmatpush1.msra.mxu0 0.0
          %285 = vmatprep.subr.mxu0 0.0
          %286 = vmatpush1.msra.mxu0 0.0
          %287 = vmatprep.subr.mxu0 0.0
          %288 = vmatpush1.msra.mxu0 0.0
          %289 = vmatprep.subr.mxu0 0.0
          %290 = vmatpush1.msra.mxu0 0.0
          %291 = vmatprep.subr.mxu0 0.0
          %292 = vmatpush1.msra.mxu0 0.0
          %293 = vmatprep.subr.mxu0 0.0
          %294 = vmatpush1.msra.mxu0 0.0
          %295 = vmatprep.subr.mxu0 0.0
          %296 = vmatpush1.msra.mxu0 0.0
          %297 = vmatprep.subr.mxu0 0.0
          %298 = vmatpush1.msra.mxu0 0.0
          %299 = vmatprep.subr.mxu0 0.0
          %300 = vmatpush1.msra.mxu0 0.0
          %301 = vmatprep.subr.mxu0 0.0
          %302 = vmatpush1.msra.mxu0 0.0
          %303 = vmatprep.subr.mxu0 0.0
          %304 = vmatpush1.msra.mxu0 0.0
          %305 = vmatprep.subr.mxu0 0.0
          %306 = vmatpush1.msra.mxu0 0.0
          %307 = vmatprep.subr.mxu0 0.0
          %308 = vmatpush1.msra.mxu0 0.0
          %309 = vmatprep.subr.mxu0 0.0
          %310 = vmatpush1.msra.mxu0 0.0
          %311 = vmatprep.subr.mxu0 0.0
          %312 = vmatpush1.msra.mxu0 0.0
          %313 = vmatprep.subr.mxu0 0.0
          %314 = vmatpush1.msra.mxu0 0.0
          %315 = vmatprep.mubr.f32.mxu0 0.0
          %316 = vmatmul.mubr.f32.gmra.mrb[0].mxu0 %v246
          %v317 = vpop.f32.mrb[0].mxu0
          %v318 = vadd.f32 0.0, %v317
          %v319 = vpop.f32.mrb[0].mxu0
          %320 = vdwg.mxu0
          %v321 = vsel %vm245, %v238, 0
          %v323 = vsel %vm248, %v237, 0
          %325 = vmatprep.subr.mxu0 0.0
          %326 = vmatpush1.msra.mxu0 %v323
          %327 = vmatprep.subr.mxu0 0.0
          %328 = vmatpush1.msra.mxu0 0.0
          %329 = vmatprep.subr.mxu0 0.0
          %330 = vmatpush1.msra.mxu0 0.0
          %331 = vmatprep.subr.mxu0 0.0
          %332 = vmatpush1.msra.mxu0 0.0
          %333 = vmatprep.subr.mxu0 0.0
          %334 = vmatpush1.msra.mxu0 0.0
          %335 = vmatprep.subr.mxu0 0.0
          %336 = vmatpush1.msra.mxu0 0.0
          %337 = vmatprep.subr.mxu0 0.0
          %338 = vmatpush1.msra.mxu0 0.0
          %339 = vmatprep.subr.mxu0 0.0
          %340 = vmatpush1.msra.mxu0 0.0
          %341 = vmatprep.subr.mxu0 0.0
          %342 = vmatpush1.msra.mxu0 0.0
          %343 = vmatprep.subr.mxu0 0.0
          %344 = vmatpush1.msra.mxu0 0.0
          %345 = vmatprep.subr.mxu0 0.0
          %346 = vmatpush1.msra.mxu0 0.0
          %347 = vmatprep.subr.mxu0 0.0
          %348 = vmatpush1.msra.mxu0 0.0
          %349 = vmatprep.subr.mxu0 0.0
          %350 = vmatpush1.msra.mxu0 0.0
          %351 = vmatprep.subr.mxu0 0.0
          %352 = vmatpush1.msra.mxu0 0.0
          %353 = vmatprep.subr.mxu0 0.0
          %354 = vmatpush1.msra.mxu0 0.0
          %355 = vmatprep.subr.mxu0 0.0
          %356 = vmatpush1.msra.mxu0 0.0
          %357 = vmatprep.subr.mxu0 0.0
          %358 = vmatpush1.msra.mxu0 0.0
          %359 = vmatprep.subr.mxu0 0.0
          %360 = vmatpush1.msra.mxu0 0.0
          %361 = vmatprep.subr.mxu0 0.0
          %362 = vmatpush1.msra.mxu0 0.0
          %363 = vmatprep.subr.mxu0 0.0
          %364 = vmatpush1.msra.mxu0 0.0
          %365 = vmatprep.subr.mxu0 0.0
          %366 = vmatpush1.msra.mxu0 0.0
          %367 = vmatprep.subr.mxu0 0.0
          %368 = vmatpush1.msra.mxu0 0.0
          %369 = vmatprep.subr.mxu0 0.0
          %370 = vmatpush1.msra.mxu0 0.0
          %371 = vmatprep.subr.mxu0 0.0
          %372 = vmatpush1.msra.mxu0 0.0
          %373 = vmatprep.subr.mxu0 0.0
          %374 = vmatpush1.msra.mxu0 0.0
          %375 = vmatprep.subr.mxu0 0.0
          %376 = vmatpush1.msra.mxu0 0.0
          %377 = vmatprep.subr.mxu0 0.0
          %378 = vmatpush1.msra.mxu0 0.0
          %379 = vmatprep.subr.mxu0 0.0
          %380 = vmatpush1.msra.mxu0 0.0
          %381 = vmatprep.subr.mxu0 0.0
          %382 = vmatpush1.msra.mxu0 0.0
          %383 = vmatprep.subr.mxu0 0.0
          %384 = vmatpush1.msra.mxu0 0.0
          %385 = vmatprep.subr.mxu0 0.0
          %386 = vmatpush1.msra.mxu0 0.0
          %387 = vmatprep.subr.mxu0 0.0
          %388 = vmatpush1.msra.mxu0 0.0
          %389 = vmatprep.mubr.f32.mxu0 0.0
          %390 = vmatmul.mubr.f32.gmra.mrb[0].mxu0 %v321
          %v391 = vpop.f32.mrb[0].mxu0
          %v392 = vadd.f32 %v318, %v391
          %v393 = vpop.f32.mrb[0].mxu0
          %394 = vdwg.mxu0
          %395 = vrot.lane.b32.xlu0 %v238, 120
          %v396 = vpop.permute.xlu0 %395
          %397 = vrot.lane.b32.xlu0 %v237, 126
          %v398 = vpop.permute.xlu0 %397
          %v399 = vsel %vm245, %v396, 0
          %v401 = vsel %vm248, %v398, 0
          %403 = vmatprep.subr.mxu0 0.0
          %404 = vmatpush1.msra.mxu0 %v401
          %405 = vmatprep.subr.mxu0 0.0
          %406 = vmatpush1.msra.mxu0 0.0
          %407 = vmatprep.subr.mxu0 0.0
          %408 = vmatpush1.msra.mxu0 0.0
          %409 = vmatprep.subr.mxu0 0.0
          %410 = vmatpush1.msra.mxu0 0.0
          %411 = vmatprep.subr.mxu0 0.0
          %412 = vmatpush1.msra.mxu0 0.0
          %413 = vmatprep.subr.mxu0 0.0
          %414 = vmatpush1.msra.mxu0 0.0
          %415 = vmatprep.subr.mxu0 0.0
          %416 = vmatpush1.msra.mxu0 0.0
          %417 = vmatprep.subr.mxu0 0.0
          %418 = vmatpush1.msra.mxu0 0.0
          %419 = vmatprep.subr.mxu0 0.0
          %420 = vmatpush1.msra.mxu0 0.0
          %421 = vmatprep.subr.mxu0 0.0
          %422 = vmatpush1.msra.mxu0 0.0
          %423 = vmatprep.subr.mxu0 0.0
          %424 = vmatpush1.msra.mxu0 0.0
          %425 = vmatprep.subr.mxu0 0.0
          %426 = vmatpush1.msra.mxu0 0.0
          %427 = vmatprep.subr.mxu0 0.0
          %428 = vmatpush1.msra.mxu0 0.0
          %429 = vmatprep.subr.mxu0 0.0
          %430 = vmatpush1.msra.mxu0 0.0
          %431 = vmatprep.subr.mxu0 0.0
          %432 = vmatpush1.msra.mxu0 0.0
          %433 = vmatprep.subr.mxu0 0.0
          %434 = vmatpush1.msra.mxu0 0.0
          %435 = vmatprep.subr.mxu0 0.0
          %436 = vmatpush1.msra.mxu0 0.0
          %437 = vmatprep.subr.mxu0 0.0
          %438 = vmatpush1.msra.mxu0 0.0
          %439 = vmatprep.subr.mxu0 0.0
          %440 = vmatpush1.msra.mxu0 0.0
          %441 = vmatprep.subr.mxu0 0.0
          %442 = vmatpush1.msra.mxu0 0.0
          %443 = vmatprep.subr.mxu0 0.0
          %444 = vmatpush1.msra.mxu0 0.0
          %445 = vmatprep.subr.mxu0 0.0
          %446 = vmatpush1.msra.mxu0 0.0
          %447 = vmatprep.subr.mxu0 0.0
          %448 = vmatpush1.msra.mxu0 0.0
          %449 = vmatprep.subr.mxu0 0.0
          %450 = vmatpush1.msra.mxu0 0.0
          %451 = vmatprep.subr.mxu0 0.0
          %452 = vmatpush1.msra.mxu0 0.0
          %453 = vmatprep.subr.mxu0 0.0
          %454 = vmatpush1.msra.mxu0 0.0
          %455 = vmatprep.subr.mxu0 0.0
          %456 = vmatpush1.msra.mxu0 0.0
          %457 = vmatprep.subr.mxu0 0.0
          %458 = vmatpush1.msra.mxu0 0.0
          %459 = vmatprep.subr.mxu0 0.0
          %460 = vmatpush1.msra.mxu0 0.0
          %461 = vmatprep.subr.mxu0 0.0
          %462 = vmatpush1.msra.mxu0 0.0
          %463 = vmatprep.subr.mxu0 0.0
          %464 = vmatpush1.msra.mxu0 0.0
          %465 = vmatprep.subr.mxu0 0.0
          %466 = vmatpush1.msra.mxu0 0.0
          %467 = vmatprep.mubr.f32.mxu0 0.0
          %468 = vmatmul.mubr.f32.gmra.mrb[0].mxu0 %v399
          %v469 = vpop.f32.mrb[0].mxu0
          %v470 = vadd.f32 0.0, %v469
          %v471 = vpop.f32.mrb[0].mxu0
          %472 = vdwg.mxu0
          %v473 = vadd.f32 %v392, %v470
          %v474 = vld [vmem:[#allocation3] sm:$0xff]
          %vm475 = vcmask 130048
          %v476 = vsel %vm475, %v473, 0.0
          %477 = vadd.xlane.f32.xlu0 %v476
          %v478 = vpop.xlane.xlu0 %477
          %v479 = vadd.f32 %v474, %v478
          %vm480 = vcmask 7168
          %481 = vst.msk [vmem:[#allocation3] sm:$0xff] %vm480, %v479
          %v482 = vld [vmem:[#allocation4] sm:$0xff]
          %v483 = vmul.f32 %v473, %v473
          %v484 = vsel %vm475, %v483, 0.0
          %485 = vadd.xlane.f32.xlu0 %v484
          %v486 = vpop.xlane.xlu0 %485
          %v487 = vadd.f32 %v482, %v486
          %488 = vst.msk [vmem:[#allocation4] sm:$0xff] %vm480, %v487
          %s489 = scalar_lea.vmem %s210, 4
          %v490 = vld [vmem:[%s489] sm:$0xf]
          %492 = vrot.lane.b32.xlu0 %v490, 1
          %v493 = vpop.permute.xlu0 %492
          %495 = vst.msk [vmem:[#allocation2] sm:$0xf] %vm235, %v493
          %v496 = vld [vmem:[#allocation2] sm:$0xf]
          %v497 = vld [vmem:[%s1] sm:$0xff]
          %499 = vrot.lane.b32.xlu0 %v497, 124
          %v500 = vpop.permute.xlu0 %499
          %502 = vrot.lane.b32.xlu0 %v496, 127
          %v503 = vpop.permute.xlu0 %502
          %v504 = vsel %vm245, %v500, 0
          %v506 = vsel %vm248, %v503, 0
          %508 = vmatprep.subr.mxu0 0.0
          %509 = vmatpush1.msra.mxu0 %v506
          %510 = vmatprep.subr.mxu0 0.0
          %511 = vmatpush1.msra.mxu0 0.0
          %512 = vmatprep.subr.mxu0 0.0
          %513 = vmatpush1.msra.mxu0 0.0
          %514 = vmatprep.subr.mxu0 0.0
          %515 = vmatpush1.msra.mxu0 0.0
          %516 = vmatprep.subr.mxu0 0.0
          %517 = vmatpush1.msra.mxu0 0.0
          %518 = vmatprep.subr.mxu0 0.0
          %519 = vmatpush1.msra.mxu0 0.0
          %520 = vmatprep.subr.mxu0 0.0
          %521 = vmatpush1.msra.mxu0 0.0
          %522 = vmatprep.subr.mxu0 0.0
          %523 = vmatpush1.msra.mxu0 0.0
          %524 = vmatprep.subr.mxu0 0.0
          %525 = vmatpush1.msra.mxu0 0.0
          %526 = vmatprep.subr.mxu0 0.0
          %527 = vmatpush1.msra.mxu0 0.0
          %528 = vmatprep.subr.mxu0 0.0
          %529 = vmatpush1.msra.mxu0 0.0
          %530 = vmatprep.subr.mxu0 0.0
          %531 = vmatpush1.msra.mxu0 0.0
          %532 = vmatprep.subr.mxu0 0.0
          %533 = vmatpush1.msra.mxu0 0.0
          %534 = vmatprep.subr.mxu0 0.0
          %535 = vmatpush1.msra.mxu0 0.0
          %536 = vmatprep.subr.mxu0 0.0
          %537 = vmatpush1.msra.mxu0 0.0
          %538 = vmatprep.subr.mxu0 0.0
          %539 = vmatpush1.msra.mxu0 0.0
          %540 = vmatprep.subr.mxu0 0.0
          %541 = vmatpush1.msra.mxu0 0.0
          %542 = vmatprep.subr.mxu0 0.0
          %543 = vmatpush1.msra.mxu0 0.0
          %544 = vmatprep.subr.mxu0 0.0
          %545 = vmatpush1.msra.mxu0 0.0
          %546 = vmatprep.subr.mxu0 0.0
          %547 = vmatpush1.msra.mxu0 0.0
          %548 = vmatprep.subr.mxu0 0.0
          %549 = vmatpush1.msra.mxu0 0.0
          %550 = vmatprep.subr.mxu0 0.0
          %551 = vmatpush1.msra.mxu0 0.0
          %552 = vmatprep.subr.mxu0 0.0
          %553 = vmatpush1.msra.mxu0 0.0
          %554 = vmatprep.subr.mxu0 0.0
          %555 = vmatpush1.msra.mxu0 0.0
          %556 = vmatprep.subr.mxu0 0.0
          %557 = vmatpush1.msra.mxu0 0.0
          %558 = vmatprep.subr.mxu0 0.0
          %559 = vmatpush1.msra.mxu0 0.0
          %560 = vmatprep.subr.mxu0 0.0
          %561 = vmatpush1.msra.mxu0 0.0
          %562 = vmatprep.subr.mxu0 0.0
          %563 = vmatpush1.msra.mxu0 0.0
          %564 = vmatprep.subr.mxu0 0.0
          %565 = vmatpush1.msra.mxu0 0.0
          %566 = vmatprep.subr.mxu0 0.0
          %567 = vmatpush1.msra.mxu0 0.0
          %568 = vmatprep.subr.mxu0 0.0
          %569 = vmatpush1.msra.mxu0 0.0
          %570 = vmatprep.subr.mxu0 0.0
          %571 = vmatpush1.msra.mxu0 0.0
          %572 = vmatprep.mubr.f32.mxu0 0.0
          %573 = vmatmul.mubr.f32.gmra.mrb[0].mxu0 %v504
          %v574 = vpop.f32.mrb[0].mxu0
          %v575 = vadd.f32 0.0, %v574
          %v576 = vpop.f32.mrb[0].mxu0
          %577 = vdwg.mxu0
          %v578 = vsel %vm245, %v497, 0
          %v580 = vsel %vm248, %v496, 0
          %582 = vmatprep.subr.mxu0 0.0
          %583 = vmatpush1.msra.mxu0 %v580
          %584 = vmatprep.subr.mxu0 0.0
          %585 = vmatpush1.msra.mxu0 0.0
          %586 = vmatprep.subr.mxu0 0.0
          %587 = vmatpush1.msra.mxu0 0.0
          %588 = vmatprep.subr.mxu0 0.0
          %589 = vmatpush1.msra.mxu0 0.0
          %590 = vmatprep.subr.mxu0 0.0
          %591 = vmatpush1.msra.mxu0 0.0
          %592 = vmatprep.subr.mxu0 0.0
          %593 = vmatpush1.msra.mxu0 0.0
          %594 = vmatprep.subr.mxu0 0.0
          %595 = vmatpush1.msra.mxu0 0.0
          %596 = vmatprep.subr.mxu0 0.0
          %597 = vmatpush1.msra.mxu0 0.0
          %598 = vmatprep.subr.mxu0 0.0
          %599 = vmatpush1.msra.mxu0 0.0
          %600 = vmatprep.subr.mxu0 0.0
          %601 = vmatpush1.msra.mxu0 0.0
          %602 = vmatprep.subr.mxu0 0.0
          %603 = vmatpush1.msra.mxu0 0.0
          %604 = vmatprep.subr.mxu0 0.0
          %605 = vmatpush1.msra.mxu0 0.0
          %606 = vmatprep.subr.mxu0 0.0
          %607 = vmatpush1.msra.mxu0 0.0
          %608 = vmatprep.subr.mxu0 0.0
          %609 = vmatpush1.msra.mxu0 0.0
          %610 = vmatprep.subr.mxu0 0.0
          %611 = vmatpush1.msra.mxu0 0.0
          %612 = vmatprep.subr.mxu0 0.0
          %613 = vmatpush1.msra.mxu0 0.0
          %614 = vmatprep.subr.mxu0 0.0
          %615 = vmatpush1.msra.mxu0 0.0
          %616 = vmatprep.subr.mxu0 0.0
          %617 = vmatpush1.msra.mxu0 0.0
          %618 = vmatprep.subr.mxu0 0.0
          %619 = vmatpush1.msra.mxu0 0.0
          %620 = vmatprep.subr.mxu0 0.0
          %621 = vmatpush1.msra.mxu0 0.0
          %622 = vmatprep.subr.mxu0 0.0
          %623 = vmatpush1.msra.mxu0 0.0
          %624 = vmatprep.subr.mxu0 0.0
          %625 = vmatpush1.msra.mxu0 0.0
          %626 = vmatprep.subr.mxu0 0.0
          %627 = vmatpush1.msra.mxu0 0.0
          %628 = vmatprep.subr.mxu0 0.0
          %629 = vmatpush1.msra.mxu0 0.0
          %630 = vmatprep.subr.mxu0 0.0
          %631 = vmatpush1.msra.mxu0 0.0
          %632 = vmatprep.subr.mxu0 0.0
          %633 = vmatpush1.msra.mxu0 0.0
          %634 = vmatprep.subr.mxu0 0.0
          %635 = vmatpush1.msra.mxu0 0.0
          %636 = vmatprep.subr.mxu0 0.0
          %637 = vmatpush1.msra.mxu0 0.0
          %638 = vmatprep.subr.mxu0 0.0
          %639 = vmatpush1.msra.mxu0 0.0
          %640 = vmatprep.subr.mxu0 0.0
          %641 = vmatpush1.msra.mxu0 0.0
          %642 = vmatprep.subr.mxu0 0.0
          %643 = vmatpush1.msra.mxu0 0.0
          %644 = vmatprep.subr.mxu0 0.0
          %645 = vmatpush1.msra.mxu0 0.0
          %646 = vmatprep.mubr.f32.mxu0 0.0
          %647 = vmatmul.mubr.f32.gmra.mrb[0].mxu0 %v578
          %v648 = vpop.f32.mrb[0].mxu0
          %v649 = vadd.f32 %v575, %v648
          %v650 = vpop.f32.mrb[0].mxu0
          %651 = vdwg.mxu0
          %652 = vrot.lane.b32.xlu0 %v497, 120
          %v653 = vpop.permute.xlu0 %652
          %654 = vrot.lane.b32.xlu0 %v496, 126
          %v655 = vpop.permute.xlu0 %654
          %v656 = vsel %vm245, %v653, 0
          %v658 = vsel %vm248, %v655, 0
          %660 = vmatprep.subr.mxu0 0.0
          %661 = vmatpush1.msra.mxu0 %v658
          %662 = vmatprep.subr.mxu0 0.0
          %663 = vmatpush1.msra.mxu0 0.0
          %664 = vmatprep.subr.mxu0 0.0
          %665 = vmatpush1.msra.mxu0 0.0
          %666 = vmatprep.subr.mxu0 0.0
          %667 = vmatpush1.msra.mxu0 0.0
          %668 = vmatprep.subr.mxu0 0.0
          %669 = vmatpush1.msra.mxu0 0.0
          %670 = vmatprep.subr.mxu0 0.0
          %671 = vmatpush1.msra.mxu0 0.0
          %672 = vmatprep.subr.mxu0 0.0
          %673 = vmatpush1.msra.mxu0 0.0
          %674 = vmatprep.subr.mxu0 0.0
          %675 = vmatpush1.msra.mxu0 0.0
          %676 = vmatprep.subr.mxu0 0.0
          %677 = vmatpush1.msra.mxu0 0.0
          %678 = vmatprep.subr.mxu0 0.0
          %679 = vmatpush1.msra.mxu0 0.0
          %680 = vmatprep.subr.mxu0 0.0
          %681 = vmatpush1.msra.mxu0 0.0
          %682 = vmatprep.subr.mxu0 0.0
          %683 = vmatpush1.msra.mxu0 0.0
          %684 = vmatprep.subr.mxu0 0.0
          %685 = vmatpush1.msra.mxu0 0.0
          %686 = vmatprep.subr.mxu0 0.0
          %687 = vmatpush1.msra.mxu0 0.0
          %688 = vmatprep.subr.mxu0 0.0
          %689 = vmatpush1.msra.mxu0 0.0
          %690 = vmatprep.subr.mxu0 0.0
          %691 = vmatpush1.msra.mxu0 0.0
          %692 = vmatprep.subr.mxu0 0.0
          %693 = vmatpush1.msra.mxu0 0.0
          %694 = vmatprep.subr.mxu0 0.0
          %695 = vmatpush1.msra.mxu0 0.0
          %696 = vmatprep.subr.mxu0 0.0
          %697 = vmatpush1.msra.mxu0 0.0
          %698 = vmatprep.subr.mxu0 0.0
          %699 = vmatpush1.msra.mxu0 0.0
          %700 = vmatprep.subr.mxu0 0.0
          %701 = vmatpush1.msra.mxu0 0.0
          %702 = vmatprep.subr.mxu0 0.0
          %703 = vmatpush1.msra.mxu0 0.0
          %704 = vmatprep.subr.mxu0 0.0
          %705 = vmatpush1.msra.mxu0 0.0
          %706 = vmatprep.subr.mxu0 0.0
          %707 = vmatpush1.msra.mxu0 0.0
          %708 = vmatprep.subr.mxu0 0.0
          %709 = vmatpush1.msra.mxu0 0.0
          %710 = vmatprep.subr.mxu0 0.0
          %711 = vmatpush1.msra.mxu0 0.0
          %712 = vmatprep.subr.mxu0 0.0
          %713 = vmatpush1.msra.mxu0 0.0
          %714 = vmatprep.subr.mxu0 0.0
          %715 = vmatpush1.msra.mxu0 0.0
          %716 = vmatprep.subr.mxu0 0.0
          %717 = vmatpush1.msra.mxu0 0.0
          %718 = vmatprep.subr.mxu0 0.0
          %719 = vmatpush1.msra.mxu0 0.0
          %720 = vmatprep.subr.mxu0 0.0
          %721 = vmatpush1.msra.mxu0 0.0
          %722 = vmatprep.subr.mxu0 0.0
          %723 = vmatpush1.msra.mxu0 0.0
          %724 = vmatprep.mubr.f32.mxu0 0.0
          %725 = vmatmul.mubr.f32.gmra.mrb[0].mxu0 %v656
          %v726 = vpop.f32.mrb[0].mxu0
          %v727 = vadd.f32 0.0, %v726
          %v728 = vpop.f32.mrb[0].mxu0
          %729 = vdwg.mxu0
          %v730 = vadd.f32 %v649, %v727
          %v731 = vld [vmem:[#allocation3] sm:$0xff]
          %v732 = vsel %vm475, %v730, 0.0
          %733 = vadd.xlane.f32.xlu0 %v732
          %v734 = vpop.xlane.xlu0 %733
          %v735 = vadd.f32 %v731, %v734
          %736 = vst.msk [vmem:[#allocation3] sm:$0xff] %vm480, %v735
          %v737 = vld [vmem:[#allocation4] sm:$0xff]
          %v738 = vmul.f32 %v730, %v730
          %v739 = vsel %vm475, %v738, 0.0
          %740 = vadd.xlane.f32.xlu0 %v739
          %v741 = vpop.xlane.xlu0 %740
          %v742 = vadd.f32 %v737, %v741
          %743 = vst.msk [vmem:[#allocation4] sm:$0xff] %vm480, %v742
        $region44: #{tpu_custom_call.1} parent=35 // pred_fallthru
          _
        %p744 = scmp.eq.s32.totalorder %s22, 1
        %p745 = pnand %p744, %p215
        %p746 = pneg %p745
        // Predicated region
        $region45: #{tpu_custom_call.1} parent=35 // pred_check
          _
        $region46: #{tpu_custom_call.1} parent=35 // pred_check_branch
          %748 = sbr.rel (%p745) target = $region48
        $region47: #{tpu_custom_call.1} parent=35 // pred_region
          %v749 = vld [vmem:[#allocation3] sm:$0xff]
          %v750 = vmul.f32 %v749, 0.03125
          %v751 = vld [vmem:[#allocation4] sm:$0xff]
          %v752 = vmul.f32 %v751, 0.03125
          %v753 = vmul.f32 %v750, %v750
          %v754 = vsub.f32 %v752, %v753
          %v755 = vmax.f32 %v754, 0.0
          %v756 = vld [vmem:[%s2] sm:$0xff]
          %v757 = vadd.f32 %v755, 1e-05
          %v758 = vrsqrt.pop %v757
          %v759 = vmul.f32 %v756, %v758
          %vm760 = vcmask 7168
          %761 = vst.msk [vmem:[#allocation5] sm:$0xff] %vm760, %v759
          %v762 = vld [vmem:[%s3] sm:$0xff]
          %v763 = vmul.f32 %v750, %v759
          %v764 = vsub.f32 %v762, %v763
          %765 = vst.msk [vmem:[#allocation6] sm:$0xff] %vm760, %v764
        $region48: #{tpu_custom_call.1} parent=35 // pred_fallthru
          _
        // Predicated region
        $region49: #{tpu_custom_call.1} parent=35 // pred_check
          %p766 = pneg %p744
        $region50: #{tpu_custom_call.1} parent=35 // pred_check_branch
          %768 = sbr.rel (%p766) target = $region52
        $region51: #{tpu_custom_call.1} parent=35 // pred_region
          %v769 = vld [vmem:[%s210] sm:$0xf]
          %771 = vrot.lane.b32.xlu0 %v769, 1
          %v772 = vpop.permute.xlu0 %771
          %vm774 = vcmask 134152
          %775 = vst.msk [vmem:[#allocation2] sm:$0xf] %vm774, %v772
          %v776 = vld [vmem:[#allocation2] sm:$0xf]
          %v777 = vld [vmem:[%s1] sm:$0xff]
          %779 = vrot.lane.b32.xlu0 %v777, 124
          %v780 = vpop.permute.xlu0 %779
          %782 = vrot.lane.b32.xlu0 %v776, 127
          %v783 = vpop.permute.xlu0 %782
          %vm784 = vcmask 31744
          %v785 = vsel %vm784, %v780, 0
          %vm787 = vcmask 1043456
          %v788 = vsel %vm787, %v783, 0
          %790 = vmatprep.subr.mxu0 0.0
          %791 = vmatpush1.msra.mxu0 %v788
          %792 = vmatprep.subr.mxu0 0.0
          %793 = vmatpush1.msra.mxu0 0.0
          %794 = vmatprep.subr.mxu0 0.0
          %795 = vmatpush1.msra.mxu0 0.0
          %796 = vmatprep.subr.mxu0 0.0
          %797 = vmatpush1.msra.mxu0 0.0
          %798 = vmatprep.subr.mxu0 0.0
          %799 = vmatpush1.msra.mxu0 0.0
          %800 = vmatprep.subr.mxu0 0.0
          %801 = vmatpush1.msra.mxu0 0.0
          %802 = vmatprep.subr.mxu0 0.0
          %803 = vmatpush1.msra.mxu0 0.0
          %804 = vmatprep.subr.mxu0 0.0
          %805 = vmatpush1.msra.mxu0 0.0
          %806 = vmatprep.subr.mxu0 0.0
          %807 = vmatpush1.msra.mxu0 0.0
          %808 = vmatprep.subr.mxu0 0.0
          %809 = vmatpush1.msra.mxu0 0.0
          %810 = vmatprep.subr.mxu0 0.0
          %811 = vmatpush1.msra.mxu0 0.0
          %812 = vmatprep.subr.mxu0 0.0
          %813 = vmatpush1.msra.mxu0 0.0
          %814 = vmatprep.subr.mxu0 0.0
          %815 = vmatpush1.msra.mxu0 0.0
          %816 = vmatprep.subr.mxu0 0.0
          %817 = vmatpush1.msra.mxu0 0.0
          %818 = vmatprep.subr.mxu0 0.0
          %819 = vmatpush1.msra.mxu0 0.0
          %820 = vmatprep.subr.mxu0 0.0
          %821 = vmatpush1.msra.mxu0 0.0
          %822 = vmatprep.subr.mxu0 0.0
          %823 = vmatpush1.msra.mxu0 0.0
          %824 = vmatprep.subr.mxu0 0.0
          %825 = vmatpush1.msra.mxu0 0.0
          %826 = vmatprep.subr.mxu0 0.0
          %827 = vmatpush1.msra.mxu0 0.0
          %828 = vmatprep.subr.mxu0 0.0
          %829 = vmatpush1.msra.mxu0 0.0
          %830 = vmatprep.subr.mxu0 0.0
          %831 = vmatpush1.msra.mxu0 0.0
          %832 = vmatprep.subr.mxu0 0.0
          %833 = vmatpush1.msra.mxu0 0.0
          %834 = vmatprep.subr.mxu0 0.0
          %835 = vmatpush1.msra.mxu0 0.0
          %836 = vmatprep.subr.mxu0 0.0
          %837 = vmatpush1.msra.mxu0 0.0
          %838 = vmatprep.subr.mxu0 0.0
          %839 = vmatpush1.msra.mxu0 0.0
          %840 = vmatprep.subr.mxu0 0.0
          %841 = vmatpush1.msra.mxu0 0.0
          %842 = vmatprep.subr.mxu0 0.0
          %843 = vmatpush1.msra.mxu0 0.0
          %844 = vmatprep.subr.mxu0 0.0
          %845 = vmatpush1.msra.mxu0 0.0
          %846 = vmatprep.subr.mxu0 0.0
          %847 = vmatpush1.msra.mxu0 0.0
          %848 = vmatprep.subr.mxu0 0.0
          %849 = vmatpush1.msra.mxu0 0.0
          %850 = vmatprep.subr.mxu0 0.0
          %851 = vmatpush1.msra.mxu0 0.0
          %852 = vmatprep.subr.mxu0 0.0
          %853 = vmatpush1.msra.mxu0 0.0
          %854 = vmatprep.mubr.f32.mxu0 0.0
          %855 = vmatmul.mubr.f32.gmra.mrb[0].mxu0 %v785
          %v856 = vpop.f32.mrb[0].mxu0
          %v857 = vadd.f32 0.0, %v856
          %v858 = vpop.f32.mrb[0].mxu0
          %859 = vdwg.mxu0
          %v860 = vsel %vm784, %v777, 0
          %v862 = vsel %vm787, %v776, 0
          %864 = vmatprep.subr.mxu0 0.0
          %865 = vmatpush1.msra.mxu0 %v862
          %866 = vmatprep.subr.mxu0 0.0
          %867 = vmatpush1.msra.mxu0 0.0
          %868 = vmatprep.subr.mxu0 0.0
          %869 = vmatpush1.msra.mxu0 0.0
          %870 = vmatprep.subr.mxu0 0.0
          %871 = vmatpush1.msra.mxu0 0.0
          %872 = vmatprep.subr.mxu0 0.0
          %873 = vmatpush1.msra.mxu0 0.0
          %874 = vmatprep.subr.mxu0 0.0
          %875 = vmatpush1.msra.mxu0 0.0
          %876 = vmatprep.subr.mxu0 0.0
          %877 = vmatpush1.msra.mxu0 0.0
          %878 = vmatprep.subr.mxu0 0.0
          %879 = vmatpush1.msra.mxu0 0.0
          %880 = vmatprep.subr.mxu0 0.0
          %881 = vmatpush1.msra.mxu0 0.0
          %882 = vmatprep.subr.mxu0 0.0
          %883 = vmatpush1.msra.mxu0 0.0
          %884 = vmatprep.subr.mxu0 0.0
          %885 = vmatpush1.msra.mxu0 0.0
          %886 = vmatprep.subr.mxu0 0.0
          %887 = vmatpush1.msra.mxu0 0.0
          %888 = vmatprep.subr.mxu0 0.0
          %889 = vmatpush1.msra.mxu0 0.0
          %890 = vmatprep.subr.mxu0 0.0
          %891 = vmatpush1.msra.mxu0 0.0
          %892 = vmatprep.subr.mxu0 0.0
          %893 = vmatpush1.msra.mxu0 0.0
          %894 = vmatprep.subr.mxu0 0.0
          %895 = vmatpush1.msra.mxu0 0.0
          %896 = vmatprep.subr.mxu0 0.0
          %897 = vmatpush1.msra.mxu0 0.0
          %898 = vmatprep.subr.mxu0 0.0
          %899 = vmatpush1.msra.mxu0 0.0
          %900 = vmatprep.subr.mxu0 0.0
          %901 = vmatpush1.msra.mxu0 0.0
          %902 = vmatprep.subr.mxu0 0.0
          %903 = vmatpush1.msra.mxu0 0.0
          %904 = vmatprep.subr.mxu0 0.0
          %905 = vmatpush1.msra.mxu0 0.0
          %906 = vmatprep.subr.mxu0 0.0
          %907 = vmatpush1.msra.mxu0 0.0
          %908 = vmatprep.subr.mxu0 0.0
          %909 = vmatpush1.msra.mxu0 0.0
          %910 = vmatprep.subr.mxu0 0.0
          %911 = vmatpush1.msra.mxu0 0.0
          %912 = vmatprep.subr.mxu0 0.0
          %913 = vmatpush1.msra.mxu0 0.0
          %914 = vmatprep.subr.mxu0 0.0
          %915 = vmatpush1.msra.mxu0 0.0
          %916 = vmatprep.subr.mxu0 0.0
          %917 = vmatpush1.msra.mxu0 0.0
          %918 = vmatprep.subr.mxu0 0.0
          %919 = vmatpush1.msra.mxu0 0.0
          %920 = vmatprep.subr.mxu0 0.0
          %921 = vmatpush1.msra.mxu0 0.0
          %922 = vmatprep.subr.mxu0 0.0
          %923 = vmatpush1.msra.mxu0 0.0
          %924 = vmatprep.subr.mxu0 0.0
          %925 = vmatpush1.msra.mxu0 0.0
          %926 = vmatprep.subr.mxu0 0.0
          %927 = vmatpush1.msra.mxu0 0.0
          %928 = vmatprep.mubr.f32.mxu0 0.0
          %929 = vmatmul.mubr.f32.gmra.mrb[0].mxu0 %v860
          %v930 = vpop.f32.mrb[0].mxu0
          %v931 = vadd.f32 %v857, %v930
          %v932 = vpop.f32.mrb[0].mxu0
          %933 = vdwg.mxu0
          %934 = vrot.lane.b32.xlu0 %v777, 120
          %v935 = vpop.permute.xlu0 %934
          %936 = vrot.lane.b32.xlu0 %v776, 126
          %v937 = vpop.permute.xlu0 %936
          %v938 = vsel %vm784, %v935, 0
          %v940 = vsel %vm787, %v937, 0
          %942 = vmatprep.subr.mxu0 0.0
          %943 = vmatpush1.msra.mxu0 %v940
          %944 = vmatprep.subr.mxu0 0.0
          %945 = vmatpush1.msra.mxu0 0.0
          %946 = vmatprep.subr.mxu0 0.0
          %947 = vmatpush1.msra.mxu0 0.0
          %948 = vmatprep.subr.mxu0 0.0
          %949 = vmatpush1.msra.mxu0 0.0
          %950 = vmatprep.subr.mxu0 0.0
          %951 = vmatpush1.msra.mxu0 0.0
          %952 = vmatprep.subr.mxu0 0.0
          %953 = vmatpush1.msra.mxu0 0.0
          %954 = vmatprep.subr.mxu0 0.0
          %955 = vmatpush1.msra.mxu0 0.0
          %956 = vmatprep.subr.mxu0 0.0
          %957 = vmatpush1.msra.mxu0 0.0
          %958 = vmatprep.subr.mxu0 0.0
          %959 = vmatpush1.msra.mxu0 0.0
          %960 = vmatprep.subr.mxu0 0.0
          %961 = vmatpush1.msra.mxu0 0.0
          %962 = vmatprep.subr.mxu0 0.0
          %963 = vmatpush1.msra.mxu0 0.0
          %964 = vmatprep.subr.mxu0 0.0
          %965 = vmatpush1.msra.mxu0 0.0
          %966 = vmatprep.subr.mxu0 0.0
          %967 = vmatpush1.msra.mxu0 0.0
          %968 = vmatprep.subr.mxu0 0.0
          %969 = vmatpush1.msra.mxu0 0.0
          %970 = vmatprep.subr.mxu0 0.0
          %971 = vmatpush1.msra.mxu0 0.0
          %972 = vmatprep.subr.mxu0 0.0
          %973 = vmatpush1.msra.mxu0 0.0
          %974 = vmatprep.subr.mxu0 0.0
          %975 = vmatpush1.msra.mxu0 0.0
          %976 = vmatprep.subr.mxu0 0.0
          %977 = vmatpush1.msra.mxu0 0.0
          %978 = vmatprep.subr.mxu0 0.0
          %979 = vmatpush1.msra.mxu0 0.0
          %980 = vmatprep.subr.mxu0 0.0
          %981 = vmatpush1.msra.mxu0 0.0
          %982 = vmatprep.subr.mxu0 0.0
          %983 = vmatpush1.msra.mxu0 0.0
          %984 = vmatprep.subr.mxu0 0.0
          %985 = vmatpush1.msra.mxu0 0.0
          %986 = vmatprep.subr.mxu0 0.0
          %987 = vmatpush1.msra.mxu0 0.0
          %988 = vmatprep.subr.mxu0 0.0
          %989 = vmatpush1.msra.mxu0 0.0
          %990 = vmatprep.subr.mxu0 0.0
          %991 = vmatpush1.msra.mxu0 0.0
          %992 = vmatprep.subr.mxu0 0.0
          %993 = vmatpush1.msra.mxu0 0.0
          %994 = vmatprep.subr.mxu0 0.0
          %995 = vmatpush1.msra.mxu0 0.0
          %996 = vmatprep.subr.mxu0 0.0
          %997 = vmatpush1.msra.mxu0 0.0
          %998 = vmatprep.subr.mxu0 0.0
          %999 = vmatpush1.msra.mxu0 0.0
          %1000 = vmatprep.subr.mxu0 0.0
          %1001 = vmatpush1.msra.mxu0 0.0
          %1002 = vmatprep.subr.mxu0 0.0
          %1003 = vmatpush1.msra.mxu0 0.0
          %1004 = vmatprep.subr.mxu0 0.0
          %1005 = vmatpush1.msra.mxu0 0.0
          %1006 = vmatprep.mubr.f32.mxu0 0.0
          %1007 = vmatmul.mubr.f32.gmra.mrb[0].mxu0 %v938
          %v1008 = vpop.f32.mrb[0].mxu0
          %v1009 = vadd.f32 0.0, %v1008
          %v1010 = vpop.f32.mrb[0].mxu0
          %1011 = vdwg.mxu0
          %v1012 = vadd.f32 %v931, %v1009
          %v1013 = vld [vmem:[#allocation5] sm:$0xff]
          %1015 = vset.pattern.permute.xlu0 0
          %1016 = vperm.xlu0 %1015, %v1013
          %v1017 = vpop.permute.xlu0 %1016
          %v1019 = vmul.f32 %v1012, %v1017
          %v1020 = vld [vmem:[#allocation6] sm:$0xff]
          %1022 = vset.pattern.permute.xlu0 0
          %1023 = vperm.xlu0 %1022, %v1020
          %v1024 = vpop.permute.xlu0 %1023
          %v1026 = vadd.f32 %v1019, %v1024
          %vm1027 = vcmask 130048
          %1028 = vst.msk [vmem:[%s205] sm:$0xff] %vm1027, %v1026
          %s1029 = scalar_lea.vmem %s210, 4
          %v1030 = vld [vmem:[%s1029] sm:$0xf]
          %1032 = vrot.lane.b32.xlu0 %v1030, 1
          %v1033 = vpop.permute.xlu0 %1032
          %1035 = vst.msk [vmem:[#allocation2] sm:$0xf] %vm774, %v1033
          %v1036 = vld [vmem:[#allocation2] sm:$0xf]
          %v1037 = vld [vmem:[%s1] sm:$0xff]
          %1039 = vrot.lane.b32.xlu0 %v1037, 124
          %v1040 = vpop.permute.xlu0 %1039
          %1042 = vrot.lane.b32.xlu0 %v1036, 127
          %v1043 = vpop.permute.xlu0 %1042
          %v1044 = vsel %vm784, %v1040, 0
          %v1046 = vsel %vm787, %v1043, 0
          %1048 = vmatprep.subr.mxu0 0.0
          %1049 = vmatpush1.msra.mxu0 %v1046
          %1050 = vmatprep.subr.mxu0 0.0
          %1051 = vmatpush1.msra.mxu0 0.0
          %1052 = vmatprep.subr.mxu0 0.0
          %1053 = vmatpush1.msra.mxu0 0.0
          %1054 = vmatprep.subr.mxu0 0.0
          %1055 = vmatpush1.msra.mxu0 0.0
          %1056 = vmatprep.subr.mxu0 0.0
          %1057 = vmatpush1.msra.mxu0 0.0
          %1058 = vmatprep.subr.mxu0 0.0
          %1059 = vmatpush1.msra.mxu0 0.0
          %1060 = vmatprep.subr.mxu0 0.0
          %1061 = vmatpush1.msra.mxu0 0.0
          %1062 = vmatprep.subr.mxu0 0.0
          %1063 = vmatpush1.msra.mxu0 0.0
          %1064 = vmatprep.subr.mxu0 0.0
          %1065 = vmatpush1.msra.mxu0 0.0
          %1066 = vmatprep.subr.mxu0 0.0
          %1067 = vmatpush1.msra.mxu0 0.0
          %1068 = vmatprep.subr.mxu0 0.0
          %1069 = vmatpush1.msra.mxu0 0.0
          %1070 = vmatprep.subr.mxu0 0.0
          %1071 = vmatpush1.msra.mxu0 0.0
          %1072 = vmatprep.subr.mxu0 0.0
          %1073 = vmatpush1.msra.mxu0 0.0
          %1074 = vmatprep.subr.mxu0 0.0
          %1075 = vmatpush1.msra.mxu0 0.0
          %1076 = vmatprep.subr.mxu0 0.0
          %1077 = vmatpush1.msra.mxu0 0.0
          %1078 = vmatprep.subr.mxu0 0.0
          %1079 = vmatpush1.msra.mxu0 0.0
          %1080 = vmatprep.subr.mxu0 0.0
          %1081 = vmatpush1.msra.mxu0 0.0
          %1082 = vmatprep.subr.mxu0 0.0
          %1083 = vmatpush1.msra.mxu0 0.0
          %1084 = vmatprep.subr.mxu0 0.0
          %1085 = vmatpush1.msra.mxu0 0.0
          %1086 = vmatprep.subr.mxu0 0.0
          %1087 = vmatpush1.msra.mxu0 0.0
          %1088 = vmatprep.subr.mxu0 0.0
          %1089 = vmatpush1.msra.mxu0 0.0
          %1090 = vmatprep.subr.mxu0 0.0
          %1091 = vmatpush1.msra.mxu0 0.0
          %1092 = vmatprep.subr.mxu0 0.0
          %1093 = vmatpush1.msra.mxu0 0.0
          %1094 = vmatprep.subr.mxu0 0.0
          %1095 = vmatpush1.msra.mxu0 0.0
          %1096 = vmatprep.subr.mxu0 0.0
          %1097 = vmatpush1.msra.mxu0 0.0
          %1098 = vmatprep.subr.mxu0 0.0
          %1099 = vmatpush1.msra.mxu0 0.0
          %1100 = vmatprep.subr.mxu0 0.0
          %1101 = vmatpush1.msra.mxu0 0.0
          %1102 = vmatprep.subr.mxu0 0.0
          %1103 = vmatpush1.msra.mxu0 0.0
          %1104 = vmatprep.subr.mxu0 0.0
          %1105 = vmatpush1.msra.mxu0 0.0
          %1106 = vmatprep.subr.mxu0 0.0
          %1107 = vmatpush1.msra.mxu0 0.0
          %1108 = vmatprep.subr.mxu0 0.0
          %1109 = vmatpush1.msra.mxu0 0.0
          %1110 = vmatprep.subr.mxu0 0.0
          %1111 = vmatpush1.msra.mxu0 0.0
          %1112 = vmatprep.mubr.f32.mxu0 0.0
          %1113 = vmatmul.mubr.f32.gmra.mrb[0].mxu0 %v1044
          %v1114 = vpop.f32.mrb[0].mxu0
          %v1115 = vadd.f32 0.0, %v1114
          %v1116 = vpop.f32.mrb[0].mxu0
          %1117 = vdwg.mxu0
          %v1118 = vsel %vm784, %v1037, 0
          %v1120 = vsel %vm787, %v1036, 0
          %1122 = vmatprep.subr.mxu0 0.0
          %1123 = vmatpush1.msra.mxu0 %v1120
          %1124 = vmatprep.subr.mxu0 0.0
          %1125 = vmatpush1.msra.mxu0 0.0
          %1126 = vmatprep.subr.mxu0 0.0
          %1127 = vmatpush1.msra.mxu0 0.0
          %1128 = vmatprep.subr.mxu0 0.0
          %1129 = vmatpush1.msra.mxu0 0.0
          %1130 = vmatprep.subr.mxu0 0.0
          %1131 = vmatpush1.msra.mxu0 0.0
          %1132 = vmatprep.subr.mxu0 0.0
          %1133 = vmatpush1.msra.mxu0 0.0
          %1134 = vmatprep.subr.mxu0 0.0
          %1135 = vmatpush1.msra.mxu0 0.0
          %1136 = vmatprep.subr.mxu0 0.0
          %1137 = vmatpush1.msra.mxu0 0.0
          %1138 = vmatprep.subr.mxu0 0.0
          %1139 = vmatpush1.msra.mxu0 0.0
          %1140 = vmatprep.subr.mxu0 0.0
          %1141 = vmatpush1.msra.mxu0 0.0
          %1142 = vmatprep.subr.mxu0 0.0
          %1143 = vmatpush1.msra.mxu0 0.0
          %1144 = vmatprep.subr.mxu0 0.0
          %1145 = vmatpush1.msra.mxu0 0.0
          %1146 = vmatprep.subr.mxu0 0.0
          %1147 = vmatpush1.msra.mxu0 0.0
          %1148 = vmatprep.subr.mxu0 0.0
          %1149 = vmatpush1.msra.mxu0 0.0
          %1150 = vmatprep.subr.mxu0 0.0
          %1151 = vmatpush1.msra.mxu0 0.0
          %1152 = vmatprep.subr.mxu0 0.0
          %1153 = vmatpush1.msra.mxu0 0.0
          %1154 = vmatprep.subr.mxu0 0.0
          %1155 = vmatpush1.msra.mxu0 0.0
          %1156 = vmatprep.subr.mxu0 0.0
          %1157 = vmatpush1.msra.mxu0 0.0
          %1158 = vmatprep.subr.mxu0 0.0
          %1159 = vmatpush1.msra.mxu0 0.0
          %1160 = vmatprep.subr.mxu0 0.0
          %1161 = vmatpush1.msra.mxu0 0.0
          %1162 = vmatprep.subr.mxu0 0.0
          %1163 = vmatpush1.msra.mxu0 0.0
          %1164 = vmatprep.subr.mxu0 0.0
          %1165 = vmatpush1.msra.mxu0 0.0
          %1166 = vmatprep.subr.mxu0 0.0
          %1167 = vmatpush1.msra.mxu0 0.0
          %1168 = vmatprep.subr.mxu0 0.0
          %1169 = vmatpush1.msra.mxu0 0.0
          %1170 = vmatprep.subr.mxu0 0.0
          %1171 = vmatpush1.msra.mxu0 0.0
          %1172 = vmatprep.subr.mxu0 0.0
          %1173 = vmatpush1.msra.mxu0 0.0
          %1174 = vmatprep.subr.mxu0 0.0
          %1175 = vmatpush1.msra.mxu0 0.0
          %1176 = vmatprep.subr.mxu0 0.0
          %1177 = vmatpush1.msra.mxu0 0.0
          %1178 = vmatprep.subr.mxu0 0.0
          %1179 = vmatpush1.msra.mxu0 0.0
          %1180 = vmatprep.subr.mxu0 0.0
          %1181 = vmatpush1.msra.mxu0 0.0
          %1182 = vmatprep.subr.mxu0 0.0
          %1183 = vmatpush1.msra.mxu0 0.0
          %1184 = vmatprep.subr.mxu0 0.0
          %1185 = vmatpush1.msra.mxu0 0.0
          %1186 = vmatprep.mubr.f32.mxu0 0.0
          %1187 = vmatmul.mubr.f32.gmra.mrb[0].mxu0 %v1118
          %v1188 = vpop.f32.mrb[0].mxu0
          %v1189 = vadd.f32 %v1115, %v1188
          %v1190 = vpop.f32.mrb[0].mxu0
          %1191 = vdwg.mxu0
          %1192 = vrot.lane.b32.xlu0 %v1037, 120
          %v1193 = vpop.permute.xlu0 %1192
          %1194 = vrot.lane.b32.xlu0 %v1036, 126
          %v1195 = vpop.permute.xlu0 %1194
          %v1196 = vsel %vm784, %v1193, 0
          %v1198 = vsel %vm787, %v1195, 0
          %1200 = vmatprep.subr.mxu0 0.0
          %1201 = vmatpush1.msra.mxu0 %v1198
          %1202 = vmatprep.subr.mxu0 0.0
          %1203 = vmatpush1.msra.mxu0 0.0
          %1204 = vmatprep.subr.mxu0 0.0
          %1205 = vmatpush1.msra.mxu0 0.0
          %1206 = vmatprep.subr.mxu0 0.0
          %1207 = vmatpush1.msra.mxu0 0.0
          %1208 = vmatprep.subr.mxu0 0.0
          %1209 = vmatpush1.msra.mxu0 0.0
          %1210 = vmatprep.subr.mxu0 0.0
          %1211 = vmatpush1.msra.mxu0 0.0
          %1212 = vmatprep.subr.mxu0 0.0
          %1213 = vmatpush1.msra.mxu0 0.0
          %1214 = vmatprep.subr.mxu0 0.0
          %1215 = vmatpush1.msra.mxu0 0.0
          %1216 = vmatprep.subr.mxu0 0.0
          %1217 = vmatpush1.msra.mxu0 0.0
          %1218 = vmatprep.subr.mxu0 0.0
          %1219 = vmatpush1.msra.mxu0 0.0
          %1220 = vmatprep.subr.mxu0 0.0
          %1221 = vmatpush1.msra.mxu0 0.0
          %1222 = vmatprep.subr.mxu0 0.0
          %1223 = vmatpush1.msra.mxu0 0.0
          %1224 = vmatprep.subr.mxu0 0.0
          %1225 = vmatpush1.msra.mxu0 0.0
          %1226 = vmatprep.subr.mxu0 0.0
          %1227 = vmatpush1.msra.mxu0 0.0
          %1228 = vmatprep.subr.mxu0 0.0
          %1229 = vmatpush1.msra.mxu0 0.0
          %1230 = vmatprep.subr.mxu0 0.0
          %1231 = vmatpush1.msra.mxu0 0.0
          %1232 = vmatprep.subr.mxu0 0.0
          %1233 = vmatpush1.msra.mxu0 0.0
          %1234 = vmatprep.subr.mxu0 0.0
          %1235 = vmatpush1.msra.mxu0 0.0
          %1236 = vmatprep.subr.mxu0 0.0
          %1237 = vmatpush1.msra.mxu0 0.0
          %1238 = vmatprep.subr.mxu0 0.0
          %1239 = vmatpush1.msra.mxu0 0.0
          %1240 = vmatprep.subr.mxu0 0.0
          %1241 = vmatpush1.msra.mxu0 0.0
          %1242 = vmatprep.subr.mxu0 0.0
          %1243 = vmatpush1.msra.mxu0 0.0
          %1244 = vmatprep.subr.mxu0 0.0
          %1245 = vmatpush1.msra.mxu0 0.0
          %1246 = vmatprep.subr.mxu0 0.0
          %1247 = vmatpush1.msra.mxu0 0.0
          %1248 = vmatprep.subr.mxu0 0.0
          %1249 = vmatpush1.msra.mxu0 0.0
          %1250 = vmatprep.subr.mxu0 0.0
          %1251 = vmatpush1.msra.mxu0 0.0
          %1252 = vmatprep.subr.mxu0 0.0
          %1253 = vmatpush1.msra.mxu0 0.0
          %1254 = vmatprep.subr.mxu0 0.0
          %1255 = vmatpush1.msra.mxu0 0.0
          %1256 = vmatprep.subr.mxu0 0.0
          %1257 = vmatpush1.msra.mxu0 0.0
          %1258 = vmatprep.subr.mxu0 0.0
          %1259 = vmatpush1.msra.mxu0 0.0
          %1260 = vmatprep.subr.mxu0 0.0
          %1261 = vmatpush1.msra.mxu0 0.0
          %1262 = vmatprep.subr.mxu0 0.0
          %1263 = vmatpush1.msra.mxu0 0.0
          %1264 = vmatprep.mubr.f32.mxu0 0.0
          %1265 = vmatmul.mubr.f32.gmra.mrb[0].mxu0 %v1196
          %v1266 = vpop.f32.mrb[0].mxu0
          %v1267 = vadd.f32 0.0, %v1266
          %v1268 = vpop.f32.mrb[0].mxu0
          %1269 = vdwg.mxu0
          %v1270 = vadd.f32 %v1189, %v1267
          %v1271 = vld [vmem:[#allocation5] sm:$0xff]
          %1273 = vset.pattern.permute.xlu0 0
          %1274 = vperm.xlu0 %1273, %v1271
          %v1275 = vpop.permute.xlu0 %1274
          %v1277 = vmul.f32 %v1270, %v1275
          %v1278 = vld [vmem:[#allocation6] sm:$0xff]
          %1280 = vset.pattern.permute.xlu0 0
          %1281 = vperm.xlu0 %1280, %v1278
          %v1282 = vpop.permute.xlu0 %1281
          %v1284 = vadd.f32 %v1277, %v1282
          %s1285 = scalar_lea.vmem %s205, 8 [#allocation7]
          %1286 = vst.msk [vmem:[%s1285] sm:$0xff] %vm1027, %v1284
        $region52: #{tpu_custom_call.1} parent=35 // pred_fallthru
          _
        %s1287 = sand.u32 %s129, 1
        %s1288 = scalar_lea.sflag [#allocation8], %s1287
        %s1289 = sand.u32 %s129, 1
        %s1290 = smul.addr %s1289, 16
        %s1291 = scalar_lea.vmem [#allocation7], %s1290
        // Predicated region
        $region53: #{tpu_custom_call.1} parent=35 // pred_check
          %p1292 = pneg %p139
        $region54: #{tpu_custom_call.1} parent=35 // pred_check_branch
          %1294 = sbr.rel (%p1292) target = $region56
        $region55: #{tpu_custom_call.1} parent=35 // pred_region
          %s1295 = smul.u32 %s22, %s23
          %s1296 = smul.u32 2, %s1295
          %s1298 = ssub.s32 256, 256
          %1299 = vsyncadd %s1288, %s1298
          %s1300 = smul.addr %s1296, 128
          %s1301 = scalar_lea.hbm %s4, %s1300
          %s1302 = sshll.u32 %s1291, 4
          %s1303 = int_to_ptr.vmem [resolvable:$true] %s1302
          %1308 = dma.vmem_to_hbm [thread:$0]  %s1303, 256, %s1301, %s1288, 128, 128, 8
        $region56: #{tpu_custom_call.1} parent=35 // pred_fallthru
          _
      $region36: #{tpu_custom_call.1} parent=5 // pred_fallthru
        _
      %p1309 = scmp.le.s32.totalorder 2, %s13
      // Predicated region
      $region57: #{tpu_custom_call.1} parent=5 // pred_check
        %p1310 = pneg %p1309
      $region58: #{tpu_custom_call.1} parent=5 // pred_check_branch
        %1312 = sbr.rel (%p1310) target = $region60
      $region59: #{tpu_custom_call.1} parent=5 // pred_region
        %s1313 = ssub.s32 %s13, 2
        // Predicated region
        $region61: #{tpu_custom_call.1} parent=59 // pred_check
          %p1314 = pneg %p145
        $region62: #{tpu_custom_call.1} parent=59 // pred_check_branch
          %1316 = sbr.rel (%p1314) target = $region64
        $region63: #{tpu_custom_call.1} parent=59 // pred_region
          %s1317 = sand.u32 %s130, 1
          %s1318 = scalar_lea.sflag [#allocation8], %s1317
          %s1319 = sand.u32 %s130, 1
          %s1320 = smul.addr %s1319, 16
          %s1321 = scalar_lea.vmem [#allocation7], %s1320
          %1322 = dma.done %s1318, 256
        $region64: #{tpu_custom_call.1} parent=59 // pred_fallthru
          _
      $region60: #{tpu_custom_call.1} parent=5 // pred_fallthru
        _
    $region6: #{tpu_custom_call.1} parent=1 // loop_footer
      %s17 = sadd.s32 1, %s13
    $region7: #{tpu_custom_call.1} parent=1 // loop_footer_branch
      %12 = sbr.rel target = $region3
    $region8: #{tpu_custom_call.1} parent=1 // loop_exit
      _
    %1323 = vsyncpa [#allocation8], 1
    %s1324 = scalar_lea.sflag [#allocation8], 1
    %1325 = vsyncpa %s1324, 1

</llo_original>
